<compile_context>
chip_gen: v7x
topology: tpu7x:2x2x1
jax: 0.10.0
libtpu: 0.0.40
codegen_flags: <defaults>
</compile_context>

<pallas_src>
import functools

import jax
import jax.numpy as jnp
from jax.experimental import pallas as pl
from jax.experimental.pallas import tpu as pltpu

EPS = 1e-6  # ScaleNorm eps
_VMEM_LIMIT = 64 * 1024 * 1024


# --------------------------------------------------------------------------
# Kernel A: ScaleNorm + joint projection + SiLU + (u, v, q, k)
# --------------------------------------------------------------------------
def _proj_kernel(x_ref, wproj_ref, bproj_ref, gamma_ref, beta_ref,
                 u_ref, v_ref, q_ref, k_ref, *, hdim):
    x = x_ref[0]                                           # [tl, D] f32
    ms = jnp.mean(jnp.square(x), axis=-1, keepdims=True)
    xn = x * jax.lax.rsqrt(ms + EPS)                       # ScaleNorm (scalar folded into w_proj)

    base = jnp.dot(xn.astype(jnp.bfloat16), wproj_ref[...],
                   preferred_element_type=jnp.float32) + bproj_ref[...]
    base = base * jax.nn.sigmoid(base)                     # SiLU in f32 (EUP)

    u_ref[0] = base[:, :hdim].astype(jnp.bfloat16)
    v_ref[0] = base[:, hdim:2 * hdim].astype(jnp.bfloat16)
    z = base[:, 2 * hdim:]                                 # [tl, Z] f32
    # gamma[0]/beta[0] already carry the 1/L scale (folded in the wrapper).
    q_ref[0] = (z * gamma_ref[0] + beta_ref[0]).astype(jnp.bfloat16)
    k_ref[0] = (z * gamma_ref[1] + beta_ref[1]).astype(jnp.bfloat16)


# --------------------------------------------------------------------------
# Kernel B: tiled relu^2 attention + gate + out-proj + residual
# --------------------------------------------------------------------------
def _attn_body(q_ref, k_ref, v_ref, u_ref, relb_ref, mask_ref, x_ref,
               wout_ref, bout_ref, y_ref, attn_ref, h_acc):
    ki = pl.program_id(2)

    @pl.when(ki == 0)
    def _():
        h_acc[...] = jnp.zeros_like(h_acc)

    # qk already carries the 1/L scale (folded into q in the wrapper).
    qk = jax.lax.dot_general(q_ref[0], k_ref[0], (((1,), (1,)), ((), ())),
                             preferred_element_type=jnp.float32)    # [tq, tk]
    qk = qk + relb_ref[...]
    qk = jnp.where(mask_ref[0] > 0.5, 0.0, qk)             # masked_fill(pad, 0.)
    m = jnp.maximum(qk, 0.0)
    attn = m * m                                           # relu^2, f32

    h_acc[...] += jnp.dot(attn.astype(jnp.bfloat16), v_ref[0],
                          preferred_element_type=jnp.float32)        # [tq, H]

    if attn_ref is not None:
        attn_ref[0] = attn.astype(attn_ref.dtype)

    @pl.when(ki == pl.num_programs(2) - 1)
    def _():
        g = u_ref[0].astype(jnp.float32) * h_acc[...]                # gate
        out = jnp.dot(g.astype(jnp.bfloat16), wout_ref[...],
                      preferred_element_type=jnp.float32) + bout_ref[...]
        y_ref[0] = x_ref[0] + out                                    # residual add


def _attn_kernel(q, k, v, u, rb, msk, x, wo, bo, y, h_acc):
    _attn_body(q, k, v, u, rb, msk, x, wo, bo, y, None, h_acc)


def _attn_kernel_with_attn(q, k, v, u, rb, msk, x, wo, bo, y, attn, h_acc):
    _attn_body(q, k, v, u, rb, msk, x, wo, bo, y, attn, h_acc)


# --------------------------------------------------------------------------
# Wrapper
# --------------------------------------------------------------------------
def flash_sentence_encoder_layer(x_lbd, padding_mask, params, *, max_positions,
                                 tile_q=256, tile_k=256, return_attn=False):
    """x_lbd: [L, B, D] f32; padding_mask: [B, L] bool (True = pad).

    Returns (y [L, B, D] f32, attn [B, L, L] bf16 or None).
    D, H, Z should be multiples of 128 and L a multiple of the tile sizes
    (lane-dense layouts; default 256 tiles match the v6e/v7x 256-wide MXU).
    """
    L, B, D = x_lbd.shape
    H = params["w_out"].shape[0]
    Z = params["gamma"].shape[1]
    P = 2 * H + Z
    assert L <= max_positions, "rel-pos bias table only covers L <= max_positions"

    tq = min(tile_q, L)
    tk = min(tile_k, L)
    assert L % tq == 0 and L % tk == 0, "L must be divisible by the tile sizes"
    nq, nk = L // tq, L // tk

    x = jnp.transpose(x_lbd, (1, 0, 2)).astype(jnp.float32)          # [B, L, D]
    mask = padding_mask.astype(jnp.float32).reshape(B, 1, L)

    # Fold the ScaleNorm scalar into w_proj and the 1/L scale into gamma/beta
    # (exact algebraic folds; removes a per-element [L,L] VPU pass and the
    # scalar operand entirely).
    scale = params["scale_scalar"][0]
    w_proj = (scale * params["w_proj"]).astype(jnp.bfloat16)          # [D, P]
    b_proj = params["b_proj"].reshape(1, P).astype(jnp.float32)
    inv_l = jnp.array([[1.0 / L], [1.0]], jnp.float32)
    gamma = (params["gamma"] * inv_l).astype(jnp.float32)             # [2, Z]
    beta = (params["beta"] * inv_l).astype(jnp.float32)               # [2, Z]
    w_out = params["w_out"].astype(jnp.bfloat16)                      # [H, D]
    b_out = params["b_out"].reshape(1, D).astype(jnp.float32)

    # Relative positional bias Toeplitz matrix (plain-JAX glue); it is only
    # streamed tile-by-tile into VMEM via its BlockSpec.
    idx = (max_positions - 1) + (jnp.arange(L)[None, :] - jnp.arange(L)[:, None])
    rel_bias = params["rel_pos_bias"][idx].astype(jnp.float32)        # [L, L]

    # ---- Kernel A -------------------------------------------------------
    proj = functools.partial(_proj_kernel, hdim=H)
    u, v, q, k = pl.pallas_call(
        proj,
        out_shape=(jax.ShapeDtypeStruct((B, L, H), jnp.bfloat16),
                   jax.ShapeDtypeStruct((B, L, H), jnp.bfloat16),
                   jax.ShapeDtypeStruct((B, L, Z), jnp.bfloat16),
                   jax.ShapeDtypeStruct((B, L, Z), jnp.bfloat16)),
        grid_spec=pltpu.PrefetchScalarGridSpec(
            num_scalar_prefetch=0,
            grid=(B, nq),
            in_specs=[
                pl.BlockSpec((1, tq, D), lambda b, i: (b, i, 0)),     # x
                pl.BlockSpec((D, P), lambda b, i: (0, 0)),            # w_proj (bf16)
                pl.BlockSpec((1, P), lambda b, i: (0, 0)),            # b_proj
                pl.BlockSpec((2, Z), lambda b, i: (0, 0)),            # gamma (pre-scaled)
                pl.BlockSpec((2, Z), lambda b, i: (0, 0)),            # beta  (pre-scaled)
            ],
            out_specs=(pl.BlockSpec((1, tq, H), lambda b, i: (b, i, 0)),
                       pl.BlockSpec((1, tq, H), lambda b, i: (b, i, 0)),
                       pl.BlockSpec((1, tq, Z), lambda b, i: (b, i, 0)),
                       pl.BlockSpec((1, tq, Z), lambda b, i: (b, i, 0))),
        ),
        compiler_params=pltpu.CompilerParams(
            dimension_semantics=("parallel", "parallel"),
            vmem_limit_bytes=_VMEM_LIMIT),
    )(x, w_proj, b_proj, gamma, beta)

    # ---- Kernel B -------------------------------------------------------
    if return_attn:
        kernel = _attn_kernel_with_attn
        out_shape = (jax.ShapeDtypeStruct((B, L, D), jnp.float32),
                     jax.ShapeDtypeStruct((B, L, L), jnp.bfloat16))
        out_specs = (pl.BlockSpec((1, tq, D), lambda b, qi, ki: (b, qi, 0)),
                     pl.BlockSpec((1, tq, tk), lambda b, qi, ki: (b, qi, ki)))
    else:
        kernel = _attn_kernel
        out_shape = (jax.ShapeDtypeStruct((B, L, D), jnp.float32),)
        out_specs = (pl.BlockSpec((1, tq, D), lambda b, qi, ki: (b, qi, 0)),)

    outs = pl.pallas_call(
        kernel,
        out_shape=out_shape,
        grid_spec=pltpu.PrefetchScalarGridSpec(
            num_scalar_prefetch=0,
            grid=(B, nq, nk),
            in_specs=[
                pl.BlockSpec((1, tq, Z), lambda b, qi, ki: (b, qi, 0)),   # q
                pl.BlockSpec((1, tk, Z), lambda b, qi, ki: (b, ki, 0)),   # k
                pl.BlockSpec((1, tk, H), lambda b, qi, ki: (b, ki, 0)),   # v
                pl.BlockSpec((1, tq, H), lambda b, qi, ki: (b, qi, 0)),   # u (gate)
                pl.BlockSpec((tq, tk), lambda b, qi, ki: (qi, ki)),       # rel-bias tile
                pl.BlockSpec((1, 1, tk), lambda b, qi, ki: (b, 0, ki)),   # key padding mask
                pl.BlockSpec((1, tq, D), lambda b, qi, ki: (b, qi, 0)),   # x (residual)
                pl.BlockSpec((H, D), lambda b, qi, ki: (0, 0)),           # w_out (bf16)
                pl.BlockSpec((1, D), lambda b, qi, ki: (0, 0)),           # b_out
            ],
            out_specs=out_specs,
            scratch_shapes=[pltpu.VMEM((tq, H), jnp.float32)],            # h accumulator
        ),
        compiler_params=pltpu.CompilerParams(
            dimension_semantics=("parallel", "parallel", "arbitrary"),
            vmem_limit_bytes=_VMEM_LIMIT),
    )(q, k, v, u, rel_bias, mask, x, w_out, b_out)

    if return_attn:
        y, attn = outs
    else:
        (y,) = outs
        attn = None
    return jnp.transpose(y, (1, 0, 2)), attn              # y: [L, B, D]


# --------------------------------------------------------------------------
# Params / reference
# --------------------------------------------------------------------------
def init_params(key, embed_dim, hidden_dim, z_dim, max_positions):
    k0, k1, k2, k3 = jax.random.split(key, 4)
    return {
        "w_proj": (embed_dim ** -0.5) * jax.random.normal(
            k0, (embed_dim, 2 * hidden_dim + z_dim), jnp.float32),
        "b_proj": jnp.zeros((2 * hidden_dim + z_dim,), jnp.float32),
        "w_out": (hidden_dim ** -0.5) * jax.random.normal(
            k1, (hidden_dim, embed_dim), jnp.float32),
        "b_out": jnp.zeros((embed_dim,), jnp.float32),
        "gamma": 0.5 * jax.random.normal(k2, (2, z_dim), jnp.float32),
        "beta": jnp.zeros((2, z_dim), jnp.float32),
        "rel_pos_bias": 0.1 * jax.random.normal(
            k3, (2 * max_positions - 1,), jnp.float32),
        "scale_scalar": jnp.ones((1,), jnp.float32),
    }


def reference(x_lbd, padding_mask, params, max_positions):
    """Pure-JAX reference mirroring the kernel's mixed precision
    (bf16 MXU inputs, f32 accumulation) for a tight correctness check."""
    L, B, D = x_lbd.shape
    H = params["w_out"].shape[0]
    bf16 = jnp.bfloat16
    scale = params["scale_scalar"][0]

    ms = jnp.mean(jnp.square(x_lbd), axis=-1, keepdims=True)
    xn = x_lbd * jax.lax.rsqrt(ms + EPS)
    wp = (scale * params["w_proj"]).astype(bf16)
    base = jnp.dot(xn.astype(bf16), wp,
                   preferred_element_type=jnp.float32) + params["b_proj"]
    base = base * jax.nn.sigmoid(base)
    u = base[..., :H].astype(bf16)
    v = base[..., H:2 * H].astype(bf16)
    z = base[..., 2 * H:]
    q = (z * (params["gamma"][0] / L) + params["beta"][0] / L).astype(bf16)
    k = (z * params["gamma"][1] + params["beta"][1]).astype(bf16)

    qb, kb, vb, ub = (jnp.transpose(t, (1, 0, 2)) for t in (q, k, v, u))
    qk = jnp.einsum("bls,bms->blm", qb, kb, preferred_element_type=jnp.float32)
    idx = (max_positions - 1) + (jnp.arange(L)[None, :] - jnp.arange(L)[:, None])
    qk = qk + params["rel_pos_bias"][idx]
    qk = jnp.where(padding_mask[:, None, :], 0.0, qk)
    attn = jnp.square(jnp.maximum(qk, 0.0))
    h = jnp.einsum("blm,bmh->blh", attn.astype(bf16), vb,
                   preferred_element_type=jnp.float32)
    g = (ub.astype(jnp.float32) * h).astype(bf16)
    out = jnp.einsum("blh,hd->bld", g, params["w_out"].astype(bf16),
                     preferred_element_type=jnp.float32) + params["b_out"]
    y = x_lbd + jnp.transpose(out, (1, 0, 2))
    return y, attn


if __name__ == "__main__":
    # Small but TPU-aligned shapes (lane dims multiples of 128, two tiles per
    # sequence so the key-axis reduction and both parallel axes are exercised).
    L, B, D, H, Z, MAXPOS = 256, 2, 128, 256, 128, 256
    key = jax.random.PRNGKey(0)
    kx, kp = jax.random.split(key)
    params = init_params(kp, D, H, Z, MAXPOS)
    x = jax.random.normal(kx, (L, B, D), jnp.float32)          # fairseq layout [L, B, D]
    padding_mask = jnp.zeros((B, L), dtype=bool).at[1, L - 16:].set(True)

    # Main (fast) path: attention matrix is not materialized.
    y, _ = flash_sentence_encoder_layer(x, padding_mask, params,
                                        max_positions=MAXPOS,
                                        tile_q=128, tile_k=128)
    jax.block_until_ready(y)

    # Optional inspection path: tiled bf16 attention output.
    y2, attn = flash_sentence_encoder_layer(x, padding_mask, params,
                                            max_positions=MAXPOS,
                                            tile_q=128, tile_k=128,
                                            return_attn=True)
    jax.block_until_ready((y2, attn))

    y_ref, attn_ref = reference(x, padding_mask, params, MAXPOS)
    assert y.shape == (L, B, D) and attn.shape == (B, L, L)
    assert jnp.allclose(y, y_ref, atol=1e-2, rtol=1e-2)
    assert jnp.allclose(y2, y_ref, atol=1e-2, rtol=1e-2)
    assert jnp.allclose(attn.astype(jnp.float32), attn_ref, atol=1e-2, rtol=1e-2)
    print("KERNEL_OK")
</pallas_src>

<mosaic_0001>
module attributes {stable_mosaic.version = 11 : i64} {
  func.func @_proj_kernel(%arg0: i32, %arg1: i32, %arg2: memref<1x128x128xf32, #tpu.memory_space<vmem>>, %arg3: memref<128x640xbf16, #tpu.memory_space<vmem>>, %arg4: memref<1x640xf32, #tpu.memory_space<vmem>>, %arg5: memref<2x128xf32, #tpu.memory_space<vmem>>, %arg6: memref<2x128xf32, #tpu.memory_space<vmem>>, %arg7: memref<1x128x256xbf16, #tpu.memory_space<vmem>>, %arg8: memref<1x128x256xbf16, #tpu.memory_space<vmem>>, %arg9: memref<1x128x128xbf16, #tpu.memory_space<vmem>>, %arg10: memref<1x128x128xbf16, #tpu.memory_space<vmem>>) attributes {dimension_semantics = [#tpu.dimension_semantics<parallel>, #tpu.dimension_semantics<parallel>], iteration_bounds = array<i64: 2, 2>, scalar_prefetch = 0 : i64, scratch_operands = 0 : i64, tpu.core_type = #tpu.core_type<tc>, window_params = [{transform_indices = @transform_0, window_bounds = array<i64: 1, 128, 128>}, {pipeline_mode = #tpu.pipeline_mode<synchronous>, transform_indices = @transform_1, window_bounds = array<i64: 128, 640>}, {pipeline_mode = #tpu.pipeline_mode<synchronous>, transform_indices = @transform_2, window_bounds = array<i64: 1, 640>}, {pipeline_mode = #tpu.pipeline_mode<synchronous>, transform_indices = @transform_3, window_bounds = array<i64: 2, 128>}, {pipeline_mode = #tpu.pipeline_mode<synchronous>, transform_indices = @transform_4, window_bounds = array<i64: 2, 128>}, {transform_indices = @transform_5, window_bounds = array<i64: 1, 128, 256>}, {transform_indices = @transform_6, window_bounds = array<i64: 1, 128, 256>}, {transform_indices = @transform_7, window_bounds = array<i64: 1, 128, 128>}, {transform_indices = @transform_8, window_bounds = array<i64: 1, 128, 128>}]} {
    %c0 = arith.constant 0 : index
    %c0_0 = arith.constant 0 : index
    %c0_1 = arith.constant 0 : index
    %0 = vector.load %arg2[%c0, %c0_0, %c0_1] : memref<1x128x128xf32, #tpu.memory_space<vmem>>, vector<1x128x128xf32>
    %1 = vector.shape_cast %0 : vector<1x128x128xf32> to vector<128x128xf32>
    %2 = arith.mulf %1, %1 : vector<128x128xf32>
    %cst = arith.constant dense<0.000000e+00> : vector<128xf32>
    %3 = vector.multi_reduction <add>, %2, %cst [1] : vector<128x128xf32> to vector<128xf32>
    %4 = vector.shape_cast %3 : vector<128xf32> to vector<128x1xf32>
    %cst_2 = arith.constant 1.280000e+02 : f32
    %5 = vector.broadcast %cst_2 : f32 to vector<128x1xf32>
    %6 = arith.divf %4, %5 : vector<128x1xf32>
    %cst_3 = arith.constant 9.99999997E-7 : f32
    %7 = vector.broadcast %cst_3 : f32 to vector<128x1xf32>
    %8 = arith.addf %6, %7 : vector<128x1xf32>
    %9 = math.rsqrt %8 : vector<128x1xf32>
    %10 = vector.broadcast %9 : vector<128x1xf32> to vector<128x128xf32>
    %11 = arith.mulf %1, %10 : vector<128x128xf32>
    %12 = arith.truncf %11 : vector<128x128xf32> to vector<128x128xbf16>
    %c0_4 = arith.constant 0 : index
    %c0_5 = arith.constant 0 : index
    %13 = vector.load %arg3[%c0_4, %c0_5] : memref<128x640xbf16, #tpu.memory_space<vmem>>, vector<128x640xbf16>
    %cst_6 = arith.constant dense<0.000000e+00> : vector<128x640xf32>
    %14 = tpu.matmul %12, %13, %cst_6 {dimension_numbers = #tpu.dot_dimension_numbers<[1], [0], [0], [1], [0, 0, 1, 1], [], []>} : vector<128x128xbf16>, vector<128x640xbf16>, vector<128x640xf32> -> vector<128x640xf32>
    %c0_7 = arith.constant 0 : index
    %c0_8 = arith.constant 0 : index
    %15 = vector.load %arg4[%c0_7, %c0_8] : memref<1x640xf32, #tpu.memory_space<vmem>>, vector<1x640xf32>
    %16 = vector.broadcast %15 : vector<1x640xf32> to vector<128x640xf32>
    %17 = arith.addf %14, %16 : vector<128x640xf32>
    %18 = arith.negf %17 : vector<128x640xf32>
    %19 = math.exp %18 : vector<128x640xf32>
    %cst_9 = arith.constant 1.000000e+00 : f32
    %20 = vector.broadcast %cst_9 : f32 to vector<128x640xf32>
    %21 = arith.addf %20, %19 : vector<128x640xf32>
    %22 = arith.divf %20, %21 : vector<128x640xf32>
    %23 = arith.mulf %17, %22 : vector<128x640xf32>
    %24 = vector.extract_strided_slice %23 {offsets = [0, 0], sizes = [128, 256], strides = [1, 1]} : vector<128x640xf32> to vector<128x256xf32>
    %25 = arith.truncf %24 : vector<128x256xf32> to vector<128x256xbf16>
    %c0_10 = arith.constant 0 : index
    %c0_11 = arith.constant 0 : index
    %c0_12 = arith.constant 0 : index
    %26 = vector.load %arg7[%c0_10, %c0_11, %c0_12] : memref<1x128x256xbf16, #tpu.memory_space<vmem>>, vector<1x128x256xbf16>
    %27 = vector.shape_cast %26 : vector<1x128x256xbf16> to vector<128x256xbf16>
    %28 = vector.shape_cast %25 : vector<128x256xbf16> to vector<1x128x256xbf16>
    tpu.vector_store %arg7[%c0_10, %c0_11, %c0_12], %28 {strides = array<i32>} : memref<1x128x256xbf16, #tpu.memory_space<vmem>>, vector<1x128x256xbf16>,
    %29 = vector.extract_strided_slice %23 {offsets = [0, 256], sizes = [128, 256], strides = [1, 1]} : vector<128x640xf32> to vector<128x256xf32>
    %30 = arith.truncf %29 : vector<128x256xf32> to vector<128x256xbf16>
    %c0_13 = arith.constant 0 : index
    %c0_14 = arith.constant 0 : index
    %c0_15 = arith.constant 0 : index
    %31 = vector.load %arg8[%c0_13, %c0_14, %c0_15] : memref<1x128x256xbf16, #tpu.memory_space<vmem>>, vector<1x128x256xbf16>
    %32 = vector.shape_cast %31 : vector<1x128x256xbf16> to vector<128x256xbf16>
    %33 = vector.shape_cast %30 : vector<128x256xbf16> to vector<1x128x256xbf16>
    tpu.vector_store %arg8[%c0_13, %c0_14, %c0_15], %33 {strides = array<i32>} : memref<1x128x256xbf16, #tpu.memory_space<vmem>>, vector<1x128x256xbf16>,
    %34 = vector.extract_strided_slice %23 {offsets = [0, 512], sizes = [128, 128], strides = [1, 1]} : vector<128x640xf32> to vector<128x128xf32>
    %c0_16 = arith.constant 0 : index
    %c0_17 = arith.constant 0 : index
    %35 = vector.load %arg5[%c0_16, %c0_17] : memref<2x128xf32, #tpu.memory_space<vmem>>, vector<1x128xf32>
    %36 = vector.shape_cast %35 : vector<1x128xf32> to vector<128xf32>
    %37 = vector.shape_cast %36 : vector<128xf32> to vector<1x128xf32>
    %38 = vector.broadcast %37 : vector<1x128xf32> to vector<128x128xf32>
    %39 = arith.mulf %34, %38 : vector<128x128xf32>
    %c0_18 = arith.constant 0 : index
    %c0_19 = arith.constant 0 : index
    %40 = vector.load %arg6[%c0_18, %c0_19] : memref<2x128xf32, #tpu.memory_space<vmem>>, vector<1x128xf32>
    %41 = vector.shape_cast %40 : vector<1x128xf32> to vector<128xf32>
    %42 = vector.shape_cast %41 : vector<128xf32> to vector<1x128xf32>
    %43 = vector.broadcast %42 : vector<1x128xf32> to vector<128x128xf32>
    %44 = arith.addf %39, %43 : vector<128x128xf32>
    %45 = arith.truncf %44 : vector<128x128xf32> to vector<128x128xbf16>
    %c0_20 = arith.constant 0 : index
    %c0_21 = arith.constant 0 : index
    %c0_22 = arith.constant 0 : index
    %46 = vector.load %arg9[%c0_20, %c0_21, %c0_22] : memref<1x128x128xbf16, #tpu.memory_space<vmem>>, vector<1x128x128xbf16>
    %47 = vector.shape_cast %46 : vector<1x128x128xbf16> to vector<128x128xbf16>
    %48 = vector.shape_cast %45 : vector<128x128xbf16> to vector<1x128x128xbf16>
    tpu.vector_store %arg9[%c0_20, %c0_21, %c0_22], %48 {strides = array<i32>} : memref<1x128x128xbf16, #tpu.memory_space<vmem>>, vector<1x128x128xbf16>,
    %c1 = arith.constant 1 : index
    %c0_23 = arith.constant 0 : index
    %49 = vector.load %arg5[%c1, %c0_23] : memref<2x128xf32, #tpu.memory_space<vmem>>, vector<1x128xf32>
    %50 = vector.shape_cast %49 : vector<1x128xf32> to vector<128xf32>
    %51 = vector.shape_cast %50 : vector<128xf32> to vector<1x128xf32>
    %52 = vector.broadcast %51 : vector<1x128xf32> to vector<128x128xf32>
    %53 = arith.mulf %34, %52 : vector<128x128xf32>
    %c1_24 = arith.constant 1 : index
    %c0_25 = arith.constant 0 : index
    %54 = vector.load %arg6[%c1_24, %c0_25] : memref<2x128xf32, #tpu.memory_space<vmem>>, vector<1x128xf32>
    %55 = vector.shape_cast %54 : vector<1x128xf32> to vector<128xf32>
    %56 = vector.shape_cast %55 : vector<128xf32> to vector<1x128xf32>
    %57 = vector.broadcast %56 : vector<1x128xf32> to vector<128x128xf32>
    %58 = arith.addf %53, %57 : vector<128x128xf32>
    %59 = arith.truncf %58 : vector<128x128xf32> to vector<128x128xbf16>
    %c0_26 = arith.constant 0 : index
    %c0_27 = arith.constant 0 : index
    %c0_28 = arith.constant 0 : index
    %60 = vector.load %arg10[%c0_26, %c0_27, %c0_28] : memref<1x128x128xbf16, #tpu.memory_space<vmem>>, vector<1x128x128xbf16>
    %61 = vector.shape_cast %60 : vector<1x128x128xbf16> to vector<128x128xbf16>
    %62 = vector.shape_cast %59 : vector<128x128xbf16> to vector<1x128x128xbf16>
    tpu.vector_store %arg10[%c0_26, %c0_27, %c0_28], %62 {strides = array<i32>} : memref<1x128x128xbf16, #tpu.memory_space<vmem>>, vector<1x128x128xbf16>,
    return
  }
  func.func @transform_0(%arg0: i32, %arg1: i32) -> (i32, i32, i32) {
    %c0_i32 = arith.constant 0 : i32
    %c0_i32_0 = arith.constant 0 : i32
    return %arg0, %arg1, %c0_i32 : i32, i32, i32
  }
  func.func @transform_1(%arg0: i32, %arg1: i32) -> (i32, i32) {
    %c0_i32 = arith.constant 0 : i32
    %c0_i32_0 = arith.constant 0 : i32
    %c0_i32_1 = arith.constant 0 : i32
    return %c0_i32, %c0_i32_0 : i32, i32
  }
  func.func @transform_2(%arg0: i32, %arg1: i32) -> (i32, i32) {
    %c0_i32 = arith.constant 0 : i32
    %c0_i32_0 = arith.constant 0 : i32
    %c0_i32_1 = arith.constant 0 : i32
    return %c0_i32, %c0_i32_0 : i32, i32
  }
  func.func @transform_3(%arg0: i32, %arg1: i32) -> (i32, i32) {
    %c0_i32 = arith.constant 0 : i32
    %c0_i32_0 = arith.constant 0 : i32
    %c0_i32_1 = arith.constant 0 : i32
    return %c0_i32, %c0_i32_0 : i32, i32
  }
  func.func @transform_4(%arg0: i32, %arg1: i32) -> (i32, i32) {
    %c0_i32 = arith.constant 0 : i32
    %c0_i32_0 = arith.constant 0 : i32
    %c0_i32_1 = arith.constant 0 : i32
    return %c0_i32, %c0_i32_0 : i32, i32
  }
  func.func @transform_5(%arg0: i32, %arg1: i32) -> (i32, i32, i32) {
    %c0_i32 = arith.constant 0 : i32
    %c0_i32_0 = arith.constant 0 : i32
    return %arg0, %arg1, %c0_i32 : i32, i32, i32
  }
  func.func @transform_6(%arg0: i32, %arg1: i32) -> (i32, i32, i32) {
    %c0_i32 = arith.constant 0 : i32
    %c0_i32_0 = arith.constant 0 : i32
    return %arg0, %arg1, %c0_i32 : i32, i32, i32
  }
  func.func @transform_7(%arg0: i32, %arg1: i32) -> (i32, i32, i32) {
    %c0_i32 = arith.constant 0 : i32
    %c0_i32_0 = arith.constant 0 : i32
    return %arg0, %arg1, %c0_i32 : i32, i32, i32
  }
  func.func @transform_8(%arg0: i32, %arg1: i32) -> (i32, i32, i32) {
    %c0_i32 = arith.constant 0 : i32
    %c0_i32_0 = arith.constant 0 : i32
    return %arg0, %arg1, %c0_i32 : i32, i32, i32
  }
}

</mosaic_0001>

<llo_original>
// kernel: tpu_custom_call.1
$region0: #{tpu_custom_call.1}
  #allocation0 [shape = 'u32[]', space=smem, size = 0x4, offset = 0x4, fixed_abs, tag = 'smem constant byte address 0x4 - core index']
  #allocation1 [shape = 'u32[144,128]{1,0:T(1,128)}', space=vmem, size = 0x12000, scoped, tag = 'internal scratch']
  %s0 = inlined_call_operand.hbm [shape: f32[2,256,128], index: 0, kind: input, shape index: {}]
  %s1 = inlined_call_operand.hbm [shape: bf16[128,640], index: 1, kind: input, shape index: {}]
  %s2 = inlined_call_operand.hbm [shape: f32[1,640], index: 2, kind: input, shape index: {}]
  %s3 = inlined_call_operand.hbm [shape: f32[2,128], index: 3, kind: input, shape index: {}]
  %s4 = inlined_call_operand.hbm [shape: f32[2,128], index: 4, kind: input, shape index: {}]
  %s5 = inlined_call_operand.hbm [shape: bf16[2,256,256], index: 5, kind: output, shape index: {0}]
  %s6 = inlined_call_operand.hbm [shape: bf16[2,256,256], index: 6, kind: output, shape index: {1}]
  %s7 = inlined_call_operand.hbm [shape: bf16[2,256,128], index: 7, kind: output, shape index: {2}]
  %s8 = inlined_call_operand.hbm [shape: bf16[2,256,128], index: 8, kind: output, shape index: {3}]
  %9 = xla_tuple %s5, %s6, %s7, %s8
  %s10 = sld [smem:[#allocation0]]
  $region97: #{tpu_custom_call.1} parent=0
    _
  %s12 = ssub.s32 1, %s10
  %s13 = scalar_select 0, %s12, %s10
  $region1: #{tpu_custom_call.1} parent=0
    #allocation2 [shape = 'u8[131072]{0}', space=vmem, size = 0x20000, scoped, tag = 'input window, operand 0']
    #allocation3 [shape = 's32[2]{0}', space=sflag, size = 0x8, scoped, tag = 'scoped memory for tpu_custom_call.1']
    #allocation4 [shape = 's32[2]{0}', space=sflag, size = 0x8, scoped, tag = 'scoped memory for tpu_custom_call.1']
    #allocation5 [shape = 'u8[163840]{0}', space=vmem, size = 0x28000, scoped, tag = 'input window, operand 1, single buffered']
    #allocation6 [shape = 's32[1]{0}', space=sflag, size = 0x4, scoped, tag = 'scoped memory for tpu_custom_call.1']
    #allocation7 [shape = 'u8[2560]{0}', space=vmem, size = 0xc00, scoped, tag = 'input window, operand 2, single buffered']
    #allocation8 [shape = 'u8[1024]{0}', space=vmem, size = 0x400, scoped, tag = 'input window, operand 3, single buffered']
    #allocation9 [shape = 's32[1]{0}', space=sflag, size = 0x4, scoped, tag = 'scoped memory for tpu_custom_call.1']
    #allocation10 [shape = 'u8[1024]{0}', space=vmem, size = 0x400, scoped, tag = 'input window, operand 4, single buffered']
    #allocation11 [shape = 'u8[131072]{0}', space=vmem, size = 0x20000, scoped, tag = 'output window, operand 0']
    #allocation12 [shape = 'u8[131072]{0}', space=vmem, size = 0x20000, scoped, tag = 'output window, operand 1']
    #allocation13 [shape = 's32[2]{0}', space=sflag, size = 0x8, scoped, tag = 'scoped memory for tpu_custom_call.1']
    #allocation14 [shape = 'u8[65536]{0}', space=vmem, size = 0x10000, scoped, tag = 'output window, operand 2']
    #allocation15 [shape = 'u8[65536]{0}', space=vmem, size = 0x10000, scoped, tag = 'output window, operand 3']
    #allocation16 [shape = 's32[2]{0}', space=sflag, size = 0x8, scoped, tag = 'scoped memory for tpu_custom_call.1']
    %14 = vsyncpa [#allocation3], 0
    %s15 = scalar_lea.sflag [#allocation3], 1
    %16 = vsyncpa %s15, 0
    %17 = vsyncpa [#allocation6], 0
    %18 = vsyncpa [#allocation9], 0
    %19 = vsyncpa [#allocation4], 0
    %s20 = scalar_lea.sflag [#allocation4], 1
    %21 = vsyncpa %s20, 0
    %22 = vsyncpa [#allocation13], 0
    %s23 = scalar_lea.sflag [#allocation13], 1
    %24 = vsyncpa %s23, 0
    %25 = vsyncpa [#allocation16], 0
    %s26 = scalar_lea.sflag [#allocation16], 1
    %27 = vsyncpa %s26, 0
    loop: start=0, step=1, limit=6
    $region2: #{tpu_custom_call.1} parent=1 // loop_pre_header
      _
    $region3: #{tpu_custom_call.1} parent=1 // loop_header
      %s29 = sphi 0, %s33
      %p30 = scmp.ge.s32.totalorder %s29, 6
      %s36 = sphi 0, %s48
      %s37 = sphi 0, %s44
      %s38 = sphi 0, %s36
      %s39 = sphi 0, %s37
      %s40 = sphi 0, %s38
      %s41 = sphi 0, %s39
      %s53 = sphi 0, %s55
      %s56 = sphi 0, %s53
      %s57 = sphi 0, %s56
      %s73 = sphi 0, %s57
      %s77 = sphi 0, %s77
      %s79 = sphi 0, %s77
      %s80 = sphi 0, %s79
      %s94 = sphi 0, %s80
      %s98 = sphi 0, %s98
      %s100 = sphi 0, %s98
      %s101 = sphi 0, %s100
      %s115 = sphi 0, %s101
      %s119 = sphi 0, %s119
      %s121 = sphi 0, %s119
      %s122 = sphi 0, %s121
      %s136 = sphi 0, %s122
      %s140 = sphi 0, %s140
      %s142 = sphi 0, %s140
      %s143 = sphi 0, %s142
      %s157 = sphi 0, %s143
      %s165 = sphi 0, %s167
      %s168 = sphi 0, %s165
      %s169 = sphi 0, %s168
      %s185 = sphi 0, %s169
      %s193 = sphi 0, %s195
      %s196 = sphi 0, %s193
      %s197 = sphi 0, %s196
      %s213 = sphi 0, %s197
      %s221 = sphi 0, %s223
      %s224 = sphi 0, %s221
      %s225 = sphi 0, %s224
      %s241 = sphi 0, %s225
      %s249 = sphi 0, %s251
      %s252 = sphi 0, %s249
      %s253 = sphi 0, %s252
      %s269 = sphi 0, %s253
    $region4: #{tpu_custom_call.1} parent=1 // loop_header_branch
      %32 = sbr.rel (%p30) target = $region8
    $region5: #{tpu_custom_call.1} parent=1 // loop_body
      %s34 = ssub.s32 %s29, 1
      %s35 = ssub.s32 %s29, 2
      %s42 = sadd.s32 1, %s37
      %p43 = scmp.ge.s32.totalorder %s42, 2
      %s44 = scalar_select %p43, 0, %s42
      %s45 = sadd.s32 1, %s36
      %s46 = scalar_select %p43, %s45, %s36
      %p47 = scmp.ge.s32.totalorder %s46, 2
      %s48 = scalar_select %p47, 0, %s46
      %s49 = ssub.s32 %s36, %s48
      %s50 = ssub.s32 %s37, %s44
      %s51 = sor.u32 %s49, %s50
      %p52 = scmp.eq.s32.totalorder %s51, 0
      %s54 = sadd.s32 %s53, 1
      %s55 = scalar_select %p52, %s53, %s54
      %p58 = pneg %p52
      %p59 = scmp.eq.s32.totalorder %s29, 3
      %p60 = por %p58, %p59
      %p61 = scmp.ne.s32.totalorder %s53, %s56
      %p62 = scmp.eq.s32.totalorder %s29, 0
      %p63 = por %p61, %p62
      %p64 = scmp.ne.s32.totalorder %s53, %s56
      %p65 = scmp.eq.s32.totalorder %s34, 3
      %p66 = por %p64, %p65
      %p67 = scmp.ne.s32.totalorder %s56, %s57
      %p68 = scmp.eq.s32.totalorder %s34, 0
      %p69 = por %p67, %p68
      %p70 = scmp.ne.s32.totalorder %s56, %s57
      %p71 = scmp.eq.s32.totalorder %s35, 3
      %p72 = por %p70, %p71
      %p74 = scmp.ne.s32.totalorder %s57, %s73
      %p75 = scmp.eq.s32.totalorder %s35, 0
      %p76 = por %p74, %p75
      %s78 = sadd.s32 %s77, 1
      %p81 = scmp.eq.s32.totalorder %s29, 3
      %p82 = scmp.ne.s32.totalorder %s77, %s79
      %p83 = scmp.eq.s32.totalorder %s29, 0
      %p84 = por %p82, %p83
      %p85 = scmp.ne.s32.totalorder %s77, %s79
      %p86 = scmp.eq.s32.totalorder %s34, 3
      %p87 = por %p85, %p86
      %p88 = scmp.ne.s32.totalorder %s79, %s80
      %p89 = scmp.eq.s32.totalorder %s34, 0
      %p90 = por %p88, %p89
      %p91 = scmp.ne.s32.totalorder %s79, %s80
      %p92 = scmp.eq.s32.totalorder %s35, 3
      %p93 = por %p91, %p92
      %p95 = scmp.ne.s32.totalorder %s80, %s94
      %p96 = scmp.eq.s32.totalorder %s35, 0
      %p97 = por %p95, %p96
      %s99 = sadd.s32 %s98, 1
      %p102 = scmp.eq.s32.totalorder %s29, 3
      %p103 = scmp.ne.s32.totalorder %s98, %s100
      %p104 = scmp.eq.s32.totalorder %s29, 0
      %p105 = por %p103, %p104
      %p106 = scmp.ne.s32.totalorder %s98, %s100
      %p107 = scmp.eq.s32.totalorder %s34, 3
      %p108 = por %p106, %p107
      %p109 = scmp.ne.s32.totalorder %s100, %s101
      %p110 = scmp.eq.s32.totalorder %s34, 0
      %p111 = por %p109, %p110
      %p112 = scmp.ne.s32.totalorder %s100, %s101
      %p113 = scmp.eq.s32.totalorder %s35, 3
      %p114 = por %p112, %p113
      %p116 = scmp.ne.s32.totalorder %s101, %s115
      %p117 = scmp.eq.s32.totalorder %s35, 0
      %p118 = por %p116, %p117
      %s120 = sadd.s32 %s119, 1
      %p123 = scmp.eq.s32.totalorder %s29, 3
      %p124 = scmp.ne.s32.totalorder %s119, %s121
      %p125 = scmp.eq.s32.totalorder %s29, 0
      %p126 = por %p124, %p125
      %p127 = scmp.ne.s32.totalorder %s119, %s121
      %p128 = scmp.eq.s32.totalorder %s34, 3
      %p129 = por %p127, %p128
      %p130 = scmp.ne.s32.totalorder %s121, %s122
      %p131 = scmp.eq.s32.totalorder %s34, 0
      %p132 = por %p130, %p131
      %p133 = scmp.ne.s32.totalorder %s121, %s122
      %p134 = scmp.eq.s32.totalorder %s35, 3
      %p135 = por %p133, %p134
      %p137 = scmp.ne.s32.totalorder %s122, %s136
      %p138 = scmp.eq.s32.totalorder %s35, 0
      %p139 = por %p137, %p138
      %s141 = sadd.s32 %s140, 1
      %p144 = scmp.eq.s32.totalorder %s29, 3
      %p145 = scmp.ne.s32.totalorder %s140, %s142
      %p146 = scmp.eq.s32.totalorder %s29, 0
      %p147 = por %p145, %p146
      %p148 = scmp.ne.s32.totalorder %s140, %s142
      %p149 = scmp.eq.s32.totalorder %s34, 3
      %p150 = por %p148, %p149
      %p151 = scmp.ne.s32.totalorder %s142, %s143
      %p152 = scmp.eq.s32.totalorder %s34, 0
      %p153 = por %p151, %p152
      %p154 = scmp.ne.s32.totalorder %s142, %s143
      %p155 = scmp.eq.s32.totalorder %s35, 3
      %p156 = por %p154, %p155
      %p158 = scmp.ne.s32.totalorder %s143, %s157
      %p159 = scmp.eq.s32.totalorder %s35, 0
      %p160 = por %p158, %p159
      %s161 = ssub.s32 %s36, %s48
      %s162 = ssub.s32 %s37, %s44
      %s163 = sor.u32 %s161, %s162
      %p164 = scmp.eq.s32.totalorder %s163, 0
      %s166 = sadd.s32 %s165, 1
      %s167 = scalar_select %p164, %s165, %s166
      %p170 = pneg %p164
      %p171 = scmp.eq.s32.totalorder %s29, 3
      %p172 = por %p170, %p171
      %p173 = scmp.ne.s32.totalorder %s165, %s168
      %p174 = scmp.eq.s32.totalorder %s29, 0
      %p175 = por %p173, %p174
      %p176 = scmp.ne.s32.totalorder %s165, %s168
      %p177 = scmp.eq.s32.totalorder %s34, 3
      %p178 = por %p176, %p177
      %p179 = scmp.ne.s32.totalorder %s168, %s169
      %p180 = scmp.eq.s32.totalorder %s34, 0
      %p181 = por %p179, %p180
      %p182 = scmp.ne.s32.totalorder %s168, %s169
      %p183 = scmp.eq.s32.totalorder %s35, 3
      %p184 = por %p182, %p183
      %p186 = scmp.ne.s32.totalorder %s169, %s185
      %p187 = scmp.eq.s32.totalorder %s35, 0
      %p188 = por %p186, %p187
      %s189 = ssub.s32 %s36, %s48
      %s190 = ssub.s32 %s37, %s44
      %s191 = sor.u32 %s189, %s190
      %p192 = scmp.eq.s32.totalorder %s191, 0
      %s194 = sadd.s32 %s193, 1
      %s195 = scalar_select %p192, %s193, %s194
      %p198 = pneg %p192
      %p199 = scmp.eq.s32.totalorder %s29, 3
      %p200 = por %p198, %p199
      %p201 = scmp.ne.s32.totalorder %s193, %s196
      %p202 = scmp.eq.s32.totalorder %s29, 0
      %p203 = por %p201, %p202
      %p204 = scmp.ne.s32.totalorder %s193, %s196
      %p205 = scmp.eq.s32.totalorder %s34, 3
      %p206 = por %p204, %p205
      %p207 = scmp.ne.s32.totalorder %s196, %s197
      %p208 = scmp.eq.s32.totalorder %s34, 0
      %p209 = por %p207, %p208
      %p210 = scmp.ne.s32.totalorder %s196, %s197
      %p211 = scmp.eq.s32.totalorder %s35, 3
      %p212 = por %p210, %p211
      %p214 = scmp.ne.s32.totalorder %s197, %s213
      %p215 = scmp.eq.s32.totalorder %s35, 0
      %p216 = por %p214, %p215
      %s217 = ssub.s32 %s36, %s48
      %s218 = ssub.s32 %s37, %s44
      %s219 = sor.u32 %s217, %s218
      %p220 = scmp.eq.s32.totalorder %s219, 0
      %s222 = sadd.s32 %s221, 1
      %s223 = scalar_select %p220, %s221, %s222
      %p226 = pneg %p220
      %p227 = scmp.eq.s32.totalorder %s29, 3
      %p228 = por %p226, %p227
      %p229 = scmp.ne.s32.totalorder %s221, %s224
      %p230 = scmp.eq.s32.totalorder %s29, 0
      %p231 = por %p229, %p230
      %p232 = scmp.ne.s32.totalorder %s221, %s224
      %p233 = scmp.eq.s32.totalorder %s34, 3
      %p234 = por %p232, %p233
      %p235 = scmp.ne.s32.totalorder %s224, %s225
      %p236 = scmp.eq.s32.totalorder %s34, 0
      %p237 = por %p235, %p236
      %p238 = scmp.ne.s32.totalorder %s224, %s225
      %p239 = scmp.eq.s32.totalorder %s35, 3
      %p240 = por %p238, %p239
      %p242 = scmp.ne.s32.totalorder %s225, %s241
      %p243 = scmp.eq.s32.totalorder %s35, 0
      %p244 = por %p242, %p243
      %s245 = ssub.s32 %s36, %s48
      %s246 = ssub.s32 %s37, %s44
      %s247 = sor.u32 %s245, %s246
      %p248 = scmp.eq.s32.totalorder %s247, 0
      %s250 = sadd.s32 %s249, 1
      %s251 = scalar_select %p248, %s249, %s250
      %p254 = pneg %p248
      %p255 = scmp.eq.s32.totalorder %s29, 3
      %p256 = por %p254, %p255
      %p257 = scmp.ne.s32.totalorder %s249, %s252
      %p258 = scmp.eq.s32.totalorder %s29, 0
      %p259 = por %p257, %p258
      %p260 = scmp.ne.s32.totalorder %s249, %s252
      %p261 = scmp.eq.s32.totalorder %s34, 3
      %p262 = por %p260, %p261
      %p263 = scmp.ne.s32.totalorder %s252, %s253
      %p264 = scmp.eq.s32.totalorder %s34, 0
      %p265 = por %p263, %p264
      %p266 = scmp.ne.s32.totalorder %s252, %s253
      %p267 = scmp.eq.s32.totalorder %s35, 3
      %p268 = por %p266, %p267
      %p270 = scmp.ne.s32.totalorder %s253, %s269
      %p271 = scmp.eq.s32.totalorder %s35, 0
      %p272 = por %p270, %p271
      %p273 = scmp.le.s32.totalorder 1, %s29
      %p274 = scmp.lt.s32.totalorder %s29, 5
      %p275 = pnand %p273, %p274
      %p276 = pneg %p275
      // Predicated region
      $region9: #{tpu_custom_call.1} parent=5 // pred_check
        _
      $region10: #{tpu_custom_call.1} parent=5 // pred_check_branch
        %278 = sbr.rel (%p275) target = $region12
      $region11: #{tpu_custom_call.1} parent=5 // pred_region
        %s279 = ssub.s32 %s29, 1
        // Predicated region
        $region13: #{tpu_custom_call.1} parent=11 // pred_check
          %p280 = pneg %p90
        $region14: #{tpu_custom_call.1} parent=11 // pred_check_branch
          %282 = sbr.rel (%p280) target = $region16
        $region15: #{tpu_custom_call.1} parent=11 // pred_region
          %s284 = ssub.s32 5120, 5120
          %285 = vsyncadd [#allocation6], %s284
          %s286 = sshll.u32 [#allocation5], 4
          %s287 = int_to_ptr.vmem [resolvable:$true] %s286
          %292 = dma.hbm_to_vmem [thread:$0]  %s1, 5120, %s287, [#allocation6], 320, 320, 20
        $region16: #{tpu_custom_call.1} parent=11 // pred_fallthru
          _
        // Predicated region
        $region17: #{tpu_custom_call.1} parent=11 // pred_check
          %p293 = pneg %p111
        $region18: #{tpu_custom_call.1} parent=11 // pred_check_branch
          %295 = sbr.rel (%p293) target = $region20
        $region19: #{tpu_custom_call.1} parent=11 // pred_region
          %s297 = ssub.s32 80, 80
          %298 = vsyncadd [#allocation6], %s297
          %s300 = sshll.u32 [#allocation7], 4
          %s301 = int_to_ptr.vmem [resolvable:$true] %s300
          %303 = dma.hbm_to_vmem [thread:$0]  %s2, 80, %s301, [#allocation6]
        $region20: #{tpu_custom_call.1} parent=11 // pred_fallthru
          _
        // Predicated region
        $region21: #{tpu_custom_call.1} parent=11 // pred_check
          %p304 = pneg %p132
        $region22: #{tpu_custom_call.1} parent=11 // pred_check_branch
          %306 = sbr.rel (%p304) target = $region24
        $region23: #{tpu_custom_call.1} parent=11 // pred_region
          %s308 = ssub.s32 32, 32
          %309 = vsyncadd [#allocation9], %s308
          %s311 = sshll.u32 [#allocation8], 4
          %s312 = int_to_ptr.vmem [resolvable:$true] %s311
          %314 = dma.hbm_to_vmem [thread:$0]  %s3, 32, %s312, [#allocation9]
        $region24: #{tpu_custom_call.1} parent=11 // pred_fallthru
          _
        // Predicated region
        $region25: #{tpu_custom_call.1} parent=11 // pred_check
          %p315 = pneg %p153
        $region26: #{tpu_custom_call.1} parent=11 // pred_check_branch
          %317 = sbr.rel (%p315) target = $region28
        $region27: #{tpu_custom_call.1} parent=11 // pred_region
          %s319 = ssub.s32 32, 32
          %320 = vsyncadd [#allocation9], %s319
          %s322 = sshll.u32 [#allocation10], 4
          %s323 = int_to_ptr.vmem [resolvable:$true] %s322
          %325 = dma.hbm_to_vmem [thread:$0]  %s4, 32, %s323, [#allocation9]
        $region28: #{tpu_custom_call.1} parent=11 // pred_fallthru
          _
      $region12: #{tpu_custom_call.1} parent=5 // pred_fallthru
        _
      %p326 = scmp.lt.s32.totalorder %s29, 4
      // Predicated region
      $region29: #{tpu_custom_call.1} parent=5 // pred_check
        %p327 = pneg %p326
      $region30: #{tpu_custom_call.1} parent=5 // pred_check_branch
        %329 = sbr.rel (%p327) target = $region32
      $region31: #{tpu_custom_call.1} parent=5 // pred_region
        // Predicated region
        $region33: #{tpu_custom_call.1} parent=31 // pred_check
          %p330 = pneg %p63
        $region34: #{tpu_custom_call.1} parent=31 // pred_check_branch
          %332 = sbr.rel (%p330) target = $region36
        $region35: #{tpu_custom_call.1} parent=31 // pred_region
          %s333 = sand.u32 %s53, 1
          %s334 = scalar_lea.sflag [#allocation3], %s333
          %s335 = sand.u32 %s53, 1
          %s336 = smul.addr %s335, 128
          %s337 = scalar_lea.vmem [#allocation2], %s336
          %s338 = smul.u32 16, %s37
          %s340 = ssub.s32 2048, 2048
          %341 = vsyncadd %s334, %s340
          %s342 = smul.addr %s36, 32
          %s343 = sadd.s32 %s338, %s342
          %s344 = smul.addr %s343, 128
          %s345 = scalar_lea.hbm %s0, %s344
          %s346 = sshll.u32 %s337, 4
          %s347 = int_to_ptr.vmem [resolvable:$true] %s346
          %352 = dma.hbm_to_vmem [thread:$0]  %s345, 2048, %s347, %s334, 128, 128, 8
        $region36: #{tpu_custom_call.1} parent=31 // pred_fallthru
          _
      $region32: #{tpu_custom_call.1} parent=5 // pred_fallthru
        _
      %p353 = scmp.le.s32.totalorder 1, %s29
      %p354 = scmp.lt.s32.totalorder %s29, 5
      %p355 = pnand %p353, %p354
      %p356 = pneg %p355
      // Predicated region
      $region37: #{tpu_custom_call.1} parent=5 // pred_check
        _
      $region38: #{tpu_custom_call.1} parent=5 // pred_check_branch
        %358 = sbr.rel (%p355) target = $region40
      $region39: #{tpu_custom_call.1} parent=5 // pred_region
        %s359 = ssub.s32 %s29, 1
        %s360 = sand.u32 %s56, 1
        %s361 = scalar_lea.sflag [#allocation3], %s360
        %s362 = sand.u32 %s56, 1
        %s363 = smul.addr %s362, 128
        %s364 = scalar_lea.vmem [#allocation2], %s363
        // Predicated region
        $region41: #{tpu_custom_call.1} parent=39 // pred_check
          %p365 = pneg %p69
        $region42: #{tpu_custom_call.1} parent=39 // pred_check_branch
          %367 = sbr.rel (%p365) target = $region44
        $region43: #{tpu_custom_call.1} parent=39 // pred_region
          %368 = dma.done %s361, 2048
        $region44: #{tpu_custom_call.1} parent=39 // pred_fallthru
          _
        // Predicated region
        $region45: #{tpu_custom_call.1} parent=39 // pred_check
          %p369 = pneg %p90
        $region46: #{tpu_custom_call.1} parent=39 // pred_check_branch
          %371 = sbr.rel (%p369) target = $region48
        $region47: #{tpu_custom_call.1} parent=39 // pred_region
          %372 = dma.done [#allocation6], 5120
        $region48: #{tpu_custom_call.1} parent=39 // pred_fallthru
          _
        // Predicated region
        $region49: #{tpu_custom_call.1} parent=39 // pred_check
          %p373 = pneg %p111
        $region50: #{tpu_custom_call.1} parent=39 // pred_check_branch
          %375 = sbr.rel (%p373) target = $region52
        $region51: #{tpu_custom_call.1} parent=39 // pred_region
          %376 = dma.done [#allocation6], 80
        $region52: #{tpu_custom_call.1} parent=39 // pred_fallthru
          _
        // Predicated region
        $region53: #{tpu_custom_call.1} parent=39 // pred_check
          %p377 = pneg %p132
        $region54: #{tpu_custom_call.1} parent=39 // pred_check_branch
          %379 = sbr.rel (%p377) target = $region56
        $region55: #{tpu_custom_call.1} parent=39 // pred_region
          %380 = dma.done [#allocation9], 32
        $region56: #{tpu_custom_call.1} parent=39 // pred_fallthru
          _
        // Predicated region
        $region57: #{tpu_custom_call.1} parent=39 // pred_check
          %p381 = pneg %p153
        $region58: #{tpu_custom_call.1} parent=39 // pred_check_branch
          %383 = sbr.rel (%p381) target = $region60
        $region59: #{tpu_custom_call.1} parent=39 // pred_region
          %384 = dma.done [#allocation9], 32
        $region60: #{tpu_custom_call.1} parent=39 // pred_fallthru
          _
        %s385 = sand.u32 %s56, 1
        %s386 = scalar_lea.sflag [#allocation3], %s385
        %s387 = sand.u32 %s56, 1
        %s388 = smul.addr %s387, 128
        %s389 = scalar_lea.vmem [#allocation2], %s388
        %p390 = pneg %p69
        %p391 = pneg %p66
        %p392 = pneg %p90
        %p393 = pneg %p87
        %p394 = pneg %p111
        %p395 = pneg %p108
        %p396 = pneg %p132
        %p397 = pneg %p129
        %p398 = pneg %p153
        %p399 = pneg %p150
        %p400 = pneg %p181
        %p401 = pneg %p178
        %s402 = sand.u32 %s168, 1
        %s403 = scalar_lea.sflag [#allocation4], %s402
        %s404 = sand.u32 %s168, 1
        %s405 = smul.addr %s404, 128
        %s406 = scalar_lea.vmem [#allocation11], %s405
        %p407 = pneg %p209
        %p408 = pneg %p206
        %s409 = sand.u32 %s34, 1
        %s410 = scalar_lea.sflag [#allocation13], %s409
        %s411 = sand.u32 %s196, 1
        %s412 = smul.addr %s411, 128
        %s413 = scalar_lea.vmem [#allocation12], %s412
        %p414 = pneg %p237
        %p415 = pneg %p234
        %s416 = sand.u32 %s34, 1
        %s417 = scalar_lea.sflag [#allocation13], %s416
        %s418 = sand.u32 %s224, 1
        %s419 = smul.addr %s418, 64
        %s420 = scalar_lea.vmem [#allocation14], %s419
        %p421 = pneg %p265
        %p422 = pneg %p262
        %s423 = sand.u32 %s252, 1
        %s424 = scalar_lea.sflag [#allocation16], %s423
        %s425 = sand.u32 %s252, 1
        %s426 = smul.addr %s425, 64
        %s427 = scalar_lea.vmem [#allocation15], %s426
        %s428 = smul.u32 16, %s39
        %s429 = smul.u32 16, %s39
        %s430 = smul.u32 16, %s39
        %s431 = smul.u32 16, %s39
        %s432 = smul.u32 16, %s39
        %v434 = vld [vmem:[%s364] sm:$0xff]
        %v435 = vld [vmem:[%s364 + $0x8] sm:$0xff]
        %v436 = vld [vmem:[%s364 + $0x10] sm:$0xff]
        %v437 = vld [vmem:[%s364 + $0x18] sm:$0xff]
        %v438 = vld [vmem:[%s364 + $0x20] sm:$0xff]
        %v439 = vld [vmem:[%s364 + $0x28] sm:$0xff]
        %v440 = vld [vmem:[%s364 + $0x30] sm:$0xff]
        %v441 = vld [vmem:[%s364 + $0x38] sm:$0xff]
        %v442 = vld [vmem:[%s364 + $0x40] sm:$0xff]
        %v443 = vld [vmem:[%s364 + $0x48] sm:$0xff]
        %v444 = vld [vmem:[%s364 + $0x50] sm:$0xff]
        %v445 = vld [vmem:[%s364 + $0x58] sm:$0xff]
        %v446 = vld [vmem:[%s364 + $0x60] sm:$0xff]
        %v447 = vld [vmem:[%s364 + $0x68] sm:$0xff]
        %v448 = vld [vmem:[%s364 + $0x70] sm:$0xff]
        %v449 = vld [vmem:[%s364 + $0x78] sm:$0xff]
        %v450 = vmul.f32 %v434, %v434
        %v451 = vmul.f32 %v435, %v435
        %v452 = vmul.f32 %v436, %v436
        %v453 = vmul.f32 %v437, %v437
        %v454 = vmul.f32 %v438, %v438
        %v455 = vmul.f32 %v439, %v439
        %v456 = vmul.f32 %v440, %v440
        %v457 = vmul.f32 %v441, %v441
        %v458 = vmul.f32 %v442, %v442
        %v459 = vmul.f32 %v443, %v443
        %v460 = vmul.f32 %v444, %v444
        %v461 = vmul.f32 %v445, %v445
        %v462 = vmul.f32 %v446, %v446
        %v463 = vmul.f32 %v447, %v447
        %v464 = vmul.f32 %v448, %v448
        %v465 = vmul.f32 %v449, %v449
        %466 = vadd.xlane.f32.xlu0 %v450
        %v467 = vpop.xlane.xlu0 %466
        %468 = vadd.xlane.f32.xlu0 %v451
        %v469 = vpop.xlane.xlu0 %468
        %470 = vadd.xlane.f32.xlu0 %v452
        %v471 = vpop.xlane.xlu0 %470
        %472 = vadd.xlane.f32.xlu0 %v453
        %v473 = vpop.xlane.xlu0 %472
        %474 = vadd.xlane.f32.xlu0 %v454
        %v475 = vpop.xlane.xlu0 %474
        %476 = vadd.xlane.f32.xlu0 %v455
        %v477 = vpop.xlane.xlu0 %476
        %478 = vadd.xlane.f32.xlu0 %v456
        %v479 = vpop.xlane.xlu0 %478
        %480 = vadd.xlane.f32.xlu0 %v457
        %v481 = vpop.xlane.xlu0 %480
        %482 = vadd.xlane.f32.xlu0 %v458
        %v483 = vpop.xlane.xlu0 %482
        %484 = vadd.xlane.f32.xlu0 %v459
        %v485 = vpop.xlane.xlu0 %484
        %486 = vadd.xlane.f32.xlu0 %v460
        %v487 = vpop.xlane.xlu0 %486
        %488 = vadd.xlane.f32.xlu0 %v461
        %v489 = vpop.xlane.xlu0 %488
        %490 = vadd.xlane.f32.xlu0 %v462
        %v491 = vpop.xlane.xlu0 %490
        %492 = vadd.xlane.f32.xlu0 %v463
        %v493 = vpop.xlane.xlu0 %492
        %494 = vadd.xlane.f32.xlu0 %v464
        %v495 = vpop.xlane.xlu0 %494
        %496 = vadd.xlane.f32.xlu0 %v465
        %v497 = vpop.xlane.xlu0 %496
        %v498 = vrcp.pop 128.0
        %v499 = vmul.f32 %v467, %v498
        %v500 = vmul.f32 %v469, %v498
        %v501 = vmul.f32 %v471, %v498
        %v502 = vmul.f32 %v473, %v498
        %v503 = vmul.f32 %v475, %v498
        %v504 = vmul.f32 %v477, %v498
        %v505 = vmul.f32 %v479, %v498
        %v506 = vmul.f32 %v481, %v498
        %v507 = vmul.f32 %v483, %v498
        %v508 = vmul.f32 %v485, %v498
        %v509 = vmul.f32 %v487, %v498
        %v510 = vmul.f32 %v489, %v498
        %v511 = vmul.f32 %v491, %v498
        %v512 = vmul.f32 %v493, %v498
        %v513 = vmul.f32 %v495, %v498
        %v514 = vmul.f32 %v497, %v498
        %v515 = vadd.f32 %v499, 1e-06
        %v516 = vadd.f32 %v500, 1e-06
        %v517 = vadd.f32 %v501, 1e-06
        %v518 = vadd.f32 %v502, 1e-06
        %v519 = vadd.f32 %v503, 1e-06
        %v520 = vadd.f32 %v504, 1e-06
        %v521 = vadd.f32 %v505, 1e-06
        %v522 = vadd.f32 %v506, 1e-06
        %v523 = vadd.f32 %v507, 1e-06
        %v524 = vadd.f32 %v508, 1e-06
        %v525 = vadd.f32 %v509, 1e-06
        %v526 = vadd.f32 %v510, 1e-06
        %v527 = vadd.f32 %v511, 1e-06
        %v528 = vadd.f32 %v512, 1e-06
        %v529 = vadd.f32 %v513, 1e-06
        %v530 = vadd.f32 %v514, 1e-06
        %v531 = vrsqrt.pop %v515
        %v532 = vrsqrt.pop %v516
        %v533 = vrsqrt.pop %v517
        %v534 = vrsqrt.pop %v518
        %v535 = vrsqrt.pop %v519
        %v536 = vrsqrt.pop %v520
        %v537 = vrsqrt.pop %v521
        %v538 = vrsqrt.pop %v522
        %v539 = vrsqrt.pop %v523
        %v540 = vrsqrt.pop %v524
        %v541 = vrsqrt.pop %v525
        %v542 = vrsqrt.pop %v526
        %v543 = vrsqrt.pop %v527
        %v544 = vrsqrt.pop %v528
        %v545 = vrsqrt.pop %v529
        %v546 = vrsqrt.pop %v530
        %v547 = vmul.f32 %v434, %v531
        %v548 = vmul.f32 %v435, %v532
        %v549 = vmul.f32 %v436, %v533
        %v550 = vmul.f32 %v437, %v534
        %v551 = vmul.f32 %v438, %v535
        %v552 = vmul.f32 %v439, %v536
        %v553 = vmul.f32 %v440, %v537
        %v554 = vmul.f32 %v441, %v538
        %v555 = vmul.f32 %v442, %v539
        %v556 = vmul.f32 %v443, %v540
        %v557 = vmul.f32 %v444, %v541
        %v558 = vmul.f32 %v445, %v542
        %v559 = vmul.f32 %v446, %v543
        %v560 = vmul.f32 %v447, %v544
        %v561 = vmul.f32 %v448, %v545
        %v562 = vmul.f32 %v449, %v546
        %v563 = vpack.c.bf16 %v548, %v547
        %v564 = vpack.c.bf16 %v550, %v549
        %v565 = vpack.c.bf16 %v552, %v551
        %v566 = vpack.c.bf16 %v554, %v553
        %v567 = vpack.c.bf16 %v556, %v555
        %v568 = vpack.c.bf16 %v558, %v557
        %v569 = vpack.c.bf16 %v560, %v559
        %v570 = vpack.c.bf16 %v562, %v561
        %v571 = vld [vmem:[#allocation5] sm:$0xff]
        %v572 = vld [vmem:[#allocation5 + $0x8] sm:$0xff]
        %v573 = vld [vmem:[#allocation5 + $0x10] sm:$0xf]
        %v574 = vld [vmem:[#allocation5 + $0x14] sm:$0xff]
        %v575 = vld [vmem:[#allocation5 + $0x1c] sm:$0xff]
        %v576 = vld [vmem:[#allocation5 + $0x24] sm:$0xf]
        %v577 = vld [vmem:[#allocation5 + $0x28] sm:$0xff]
        %v578 = vld [vmem:[#allocation5 + $0x30] sm:$0xff]
        %v579 = vld [vmem:[#allocation5 + $0x38] sm:$0xf]
        %v580 = vld [vmem:[#allocation5 + $0x3c] sm:$0xff]
        %v581 = vld [vmem:[#allocation5 + $0x44] sm:$0xff]
        %v582 = vld [vmem:[#allocation5 + $0x4c] sm:$0xf]
        %v583 = vld [vmem:[#allocation5 + $0x50] sm:$0xff]
        %v584 = vld [vmem:[#allocation5 + $0x58] sm:$0xff]
        %v585 = vld [vmem:[#allocation5 + $0x60] sm:$0xf]
        %v586 = vld [vmem:[#allocation5 + $0x64] sm:$0xff]
        %v587 = vld [vmem:[#allocation5 + $0x6c] sm:$0xff]
        %v588 = vld [vmem:[#allocation5 + $0x74] sm:$0xf]
        %v589 = vld [vmem:[#allocation5 + $0x78] sm:$0xff]
        %v590 = vld [vmem:[#allocation5 + $0x80] sm:$0xff]
        %v591 = vld [vmem:[#allocation5 + $0x88] sm:$0xf]
        %v592 = vld [vmem:[#allocation5 + $0x8c] sm:$0xff]
        %v593 = vld [vmem:[#allocation5 + $0x94] sm:$0xff]
        %v594 = vld [vmem:[#allocation5 + $0x9c] sm:$0xf]
        %v595 = vld [vmem:[#allocation5 + $0xa0] sm:$0xff]
        %v596 = vld [vmem:[#allocation5 + $0xa8] sm:$0xff]
        %v597 = vld [vmem:[#allocation5 + $0xb0] sm:$0xf]
        %v598 = vld [vmem:[#allocation5 + $0xb4] sm:$0xff]
        %v599 = vld [vmem:[#allocation5 + $0xbc] sm:$0xff]
        %v600 = vld [vmem:[#allocation5 + $0xc4] sm:$0xf]
        %v601 = vld [vmem:[#allocation5 + $0xc8] sm:$0xff]
        %v602 = vld [vmem:[#allocation5 + $0xd0] sm:$0xff]
        %v603 = vld [vmem:[#allocation5 + $0xd8] sm:$0xf]
        %v604 = vld [vmem:[#allocation5 + $0xdc] sm:$0xff]
        %v605 = vld [vmem:[#allocation5 + $0xe4] sm:$0xff]
        %v606 = vld [vmem:[#allocation5 + $0xec] sm:$0xf]
        %v607 = vld [vmem:[#allocation5 + $0xf0] sm:$0xff]
        %v608 = vld [vmem:[#allocation5 + $0xf8] sm:$0xff]
        %v609 = vld [vmem:[#allocation5 + $0x100] sm:$0xf]
        %v610 = vld [vmem:[#allocation5 + $0x104] sm:$0xff]
        %v611 = vld [vmem:[#allocation5 + $0x10c] sm:$0xff]
        %v612 = vld [vmem:[#allocation5 + $0x114] sm:$0xf]
        %v613 = vld [vmem:[#allocation5 + $0x118] sm:$0xff]
        %v614 = vld [vmem:[#allocation5 + $0x120] sm:$0xff]
        %v615 = vld [vmem:[#allocation5 + $0x128] sm:$0xf]
        %v616 = vld [vmem:[#allocation5 + $0x12c] sm:$0xff]
        %v617 = vld [vmem:[#allocation5 + $0x134] sm:$0xff]
        %v618 = vld [vmem:[#allocation5 + $0x13c] sm:$0xf]
        %v619 = vld [vmem:[#allocation7] sm:$0x1f]
        %v621 = vlaneseq
        %v622 = vshrl.u32 %v621, 7
        %v623 = vsub.s32 0, %v622
        %v624 = vrot.slane %v619, %v623
        %v625 = vlaneseq
        %v626 = vshrl.u32 %v625, 7
        %v627 = vsub.s32 1, %v626
        %v628 = vrot.slane %v619, %v627
        %v629 = vlaneseq
        %v630 = vshrl.u32 %v629, 7
        %v631 = vsub.s32 2, %v630
        %v632 = vrot.slane %v619, %v631
        %v633 = vlaneseq
        %v634 = vshrl.u32 %v633, 7
        %v635 = vsub.s32 3, %v634
        %v636 = vrot.slane %v619, %v635
        %v637 = vlaneseq
        %v638 = vshrl.u32 %v637, 7
        %v639 = vsub.s32 4, %v638
        %v640 = vrot.slane %v619, %v639
        %v694 = vunpack.c.l.b16 %v571
        %v695 = vunpack.c.h.b16 %v571
        %v696 = vunpack.c.l.b16 %v572
        %v697 = vunpack.c.h.b16 %v572
        %v698 = vunpack.c.l.b16 %v573
        %v699 = vunpack.c.l.b16 %v574
        %v700 = vunpack.c.h.b16 %v574
        %v701 = vunpack.c.l.b16 %v575
        %v702 = vunpack.c.h.b16 %v575
        %v703 = vunpack.c.l.b16 %v576
        %v704 = vunpack.c.l.b16 %v577
        %v705 = vunpack.c.h.b16 %v577
        %v706 = vunpack.c.l.b16 %v578
        %v707 = vunpack.c.h.b16 %v578
        %v708 = vunpack.c.l.b16 %v579
        %v709 = vunpack.c.l.b16 %v580
        %v710 = vunpack.c.h.b16 %v580
        %v711 = vunpack.c.l.b16 %v581
        %v712 = vunpack.c.h.b16 %v581
        %v713 = vunpack.c.l.b16 %v582
        %v714 = vunpack.c.l.b16 %v583
        %v715 = vunpack.c.h.b16 %v583
        %v716 = vunpack.c.l.b16 %v584
        %v717 = vunpack.c.h.b16 %v584
        %v718 = vunpack.c.l.b16 %v585
        %v719 = vunpack.c.l.b16 %v586
        %v720 = vunpack.c.h.b16 %v586
        %v721 = vunpack.c.l.b16 %v587
        %v722 = vunpack.c.h.b16 %v587
        %v723 = vunpack.c.l.b16 %v588
        %v724 = vunpack.c.l.b16 %v589
        %v725 = vunpack.c.h.b16 %v589
        %v726 = vunpack.c.l.b16 %v590
        %v727 = vunpack.c.h.b16 %v590
        %v728 = vunpack.c.l.b16 %v591
        %v729 = vunpack.c.l.b16 %v592
        %v730 = vunpack.c.h.b16 %v592
        %v731 = vunpack.c.l.b16 %v593
        %v732 = vunpack.c.h.b16 %v593
        %v733 = vunpack.c.l.b16 %v594
        %v734 = vunpack.c.l.b16 %v595
        %v735 = vunpack.c.h.b16 %v595
        %v736 = vunpack.c.l.b16 %v596
        %v737 = vunpack.c.h.b16 %v596
        %v738 = vunpack.c.l.b16 %v597
        %v739 = vunpack.c.l.b16 %v598
        %v740 = vunpack.c.h.b16 %v598
        %v741 = vunpack.c.l.b16 %v599
        %v742 = vunpack.c.h.b16 %v599
        %v743 = vunpack.c.l.b16 %v600
        %v744 = vunpack.c.l.b16 %v601
        %v745 = vunpack.c.h.b16 %v601
        %v746 = vunpack.c.l.b16 %v602
        %v747 = vunpack.c.h.b16 %v602
        %v748 = vunpack.c.l.b16 %v603
        %v749 = vunpack.c.l.b16 %v604
        %v750 = vunpack.c.h.b16 %v604
        %v751 = vunpack.c.l.b16 %v605
        %v752 = vunpack.c.h.b16 %v605
        %v753 = vunpack.c.l.b16 %v606
        %v754 = vunpack.c.l.b16 %v607
        %v755 = vunpack.c.h.b16 %v607
        %v756 = vunpack.c.l.b16 %v608
        %v757 = vunpack.c.h.b16 %v608
        %v758 = vunpack.c.l.b16 %v609
        %v759 = vunpack.c.l.b16 %v610
        %v760 = vunpack.c.h.b16 %v610
        %v761 = vunpack.c.l.b16 %v611
        %v762 = vunpack.c.h.b16 %v611
        %v763 = vunpack.c.l.b16 %v612
        %v764 = vunpack.c.l.b16 %v613
        %v765 = vunpack.c.h.b16 %v613
        %v766 = vunpack.c.l.b16 %v614
        %v767 = vunpack.c.h.b16 %v614
        %v768 = vunpack.c.l.b16 %v615
        %v769 = vunpack.c.l.b16 %v616
        %v770 = vunpack.c.h.b16 %v616
        %v771 = vunpack.c.l.b16 %v617
        %v772 = vunpack.c.h.b16 %v617
        %v773 = vunpack.c.l.b16 %v618
        %v774 = vpack.c.b16 %v699, %v694
        %v775 = vpack.c.b16 %v700, %v695
        %v776 = vpack.c.b16 %v701, %v696
        %v777 = vpack.c.b16 %v702, %v697
        %v778 = vpack.c.b16 %v703, %v698
        %v779 = vpack.c.b16 %v709, %v704
        %v780 = vpack.c.b16 %v710, %v705
        %v781 = vpack.c.b16 %v711, %v706
        %v782 = vpack.c.b16 %v712, %v707
        %v783 = vpack.c.b16 %v713, %v708
        %v784 = vpack.c.b16 %v719, %v714
        %v785 = vpack.c.b16 %v720, %v715
        %v786 = vpack.c.b16 %v721, %v716
        %v787 = vpack.c.b16 %v722, %v717
        %v788 = vpack.c.b16 %v723, %v718
        %v789 = vpack.c.b16 %v729, %v724
        %v790 = vpack.c.b16 %v730, %v725
        %v791 = vpack.c.b16 %v731, %v726
        %v792 = vpack.c.b16 %v732, %v727
        %v793 = vpack.c.b16 %v733, %v728
        %v794 = vpack.c.b16 %v739, %v734
        %v795 = vpack.c.b16 %v740, %v735
        %v796 = vpack.c.b16 %v741, %v736
        %v797 = vpack.c.b16 %v742, %v737
        %v798 = vpack.c.b16 %v743, %v738
        %v799 = vpack.c.b16 %v749, %v744
        %v800 = vpack.c.b16 %v750, %v745
        %v801 = vpack.c.b16 %v751, %v746
        %v802 = vpack.c.b16 %v752, %v747
        %v803 = vpack.c.b16 %v753, %v748
        %v804 = vpack.c.b16 %v759, %v754
        %v805 = vpack.c.b16 %v760, %v755
        %v806 = vpack.c.b16 %v761, %v756
        %v807 = vpack.c.b16 %v762, %v757
        %v808 = vpack.c.b16 %v763, %v758
        %v809 = vpack.c.b16 %v769, %v764
        %v810 = vpack.c.b16 %v770, %v765
        %v811 = vpack.c.b16 %v771, %v766
        %v812 = vpack.c.b16 %v772, %v767
        %v813 = vpack.c.b16 %v773, %v768
        %854 = vmatprep.subr.bf16.mxu0 %v775
        %855 = vmatpush1.bf16.msra.mxu0 %v774
        %856 = vmatprep.subr.bf16.mxu0 %v780
        %857 = vmatpush1.bf16.msra.mxu0 %v779
        %858 = vmatprep.subr.bf16.mxu0 %v785
        %859 = vmatpush1.bf16.msra.mxu0 %v784
        %860 = vmatprep.subr.bf16.mxu0 %v790
        %861 = vmatpush1.bf16.msra.mxu0 %v789
        %862 = vmatprep.subr.bf16.mxu0 %v795
        %863 = vmatpush1.bf16.msra.mxu0 %v794
        %864 = vmatprep.subr.bf16.mxu0 %v800
        %865 = vmatpush1.bf16.msra.mxu0 %v799
        %866 = vmatprep.subr.bf16.mxu0 %v805
        %867 = vmatpush1.bf16.msra.mxu0 %v804
        %868 = vmatprep.subr.bf16.mxu0 %v810
        %869 = vmatpush1.bf16.msra.mxu0 %v809
        %870 = vmatprep.subr.bf16.mxu0 0
        %871 = vmatpush1.bf16.msra.mxu0 0
        %872 = vmatprep.subr.bf16.mxu0 0
        %873 = vmatpush1.bf16.msra.mxu0 0
        %874 = vmatprep.subr.bf16.mxu0 0
        %875 = vmatpush1.bf16.msra.mxu0 0
        %876 = vmatprep.subr.bf16.mxu0 0
        %877 = vmatpush1.bf16.msra.mxu0 0
        %878 = vmatprep.subr.bf16.mxu0 0
        %879 = vmatpush1.bf16.msra.mxu0 0
        %880 = vmatprep.subr.bf16.mxu0 0
        %881 = vmatpush1.bf16.msra.mxu0 0
        %882 = vmatprep.subr.bf16.mxu0 0
        %883 = vmatpush1.bf16.msra.mxu0 0
        %884 = vmatprep.subr.bf16.mxu0 0
        %885 = vmatpush1.bf16.msra.mxu0 0
        %886 = vmatprep.mubr.bf16.mxu0 0
        %887 = vmatmul.mubr.bf16.gmra.mrb[0].mxu0 %v563
        %v888 = vpop.f32.mrb[0].mxu0
        %v889 = vadd.f32 %v624, %v888
        %v890 = vpop.f32.mrb[0].mxu0
        %v891 = vadd.f32 %v628, %v890
        %v892 = vpop.f32.mrb[0].mxu0
        %v893 = vadd.f32 %v624, %v892
        %v894 = vpop.f32.mrb[0].mxu0
        %v895 = vadd.f32 %v628, %v894
        %896 = vmatprep.mubr.bf16.mxu0 0
        %897 = vmatmul.mubr.bf16.gmra.mrb[0].mxu0 %v564
        %v898 = vpop.f32.mrb[0].mxu0
        %v899 = vadd.f32 %v624, %v898
        %v900 = vpop.f32.mrb[0].mxu0
        %v901 = vadd.f32 %v628, %v900
        %v902 = vpop.f32.mrb[0].mxu0
        %v903 = vadd.f32 %v624, %v902
        %v904 = vpop.f32.mrb[0].mxu0
        %v905 = vadd.f32 %v628, %v904
        %906 = vmatprep.mubr.bf16.mxu0 0
        %907 = vmatmul.mubr.bf16.gmra.mrb[0].mxu0 %v565
        %v908 = vpop.f32.mrb[0].mxu0
        %v909 = vadd.f32 %v624, %v908
        %v910 = vpop.f32.mrb[0].mxu0
        %v911 = vadd.f32 %v628, %v910
        %v912 = vpop.f32.mrb[0].mxu0
        %v913 = vadd.f32 %v624, %v912
        %v914 = vpop.f32.mrb[0].mxu0
        %v915 = vadd.f32 %v628, %v914
        %916 = vmatprep.mubr.bf16.mxu0 0
        %917 = vmatmul.mubr.bf16.gmra.mrb[0].mxu0 %v566
        %v918 = vpop.f32.mrb[0].mxu0
        %v919 = vadd.f32 %v624, %v918
        %v920 = vpop.f32.mrb[0].mxu0
        %v921 = vadd.f32 %v628, %v920
        %v922 = vpop.f32.mrb[0].mxu0
        %v923 = vadd.f32 %v624, %v922
        %v924 = vpop.f32.mrb[0].mxu0
        %v925 = vadd.f32 %v628, %v924
        %926 = vmatprep.mubr.bf16.mxu0 0
        %927 = vmatmul.mubr.bf16.gmra.mrb[0].mxu0 %v567
        %v928 = vpop.f32.mrb[0].mxu0
        %v929 = vadd.f32 %v624, %v928
        %v930 = vpop.f32.mrb[0].mxu0
        %v931 = vadd.f32 %v628, %v930
        %v932 = vpop.f32.mrb[0].mxu0
        %v933 = vadd.f32 %v624, %v932
        %v934 = vpop.f32.mrb[0].mxu0
        %v935 = vadd.f32 %v628, %v934
        %936 = vmatprep.mubr.bf16.mxu0 0
        %937 = vmatmul.mubr.bf16.gmra.mrb[0].mxu0 %v568
        %v938 = vpop.f32.mrb[0].mxu0
        %v939 = vadd.f32 %v624, %v938
        %v940 = vpop.f32.mrb[0].mxu0
        %v941 = vadd.f32 %v628, %v940
        %v942 = vpop.f32.mrb[0].mxu0
        %v943 = vadd.f32 %v624, %v942
        %v944 = vpop.f32.mrb[0].mxu0
        %v945 = vadd.f32 %v628, %v944
        %946 = vmatprep.mubr.bf16.mxu0 0
        %947 = vmatmul.mubr.bf16.gmra.mrb[0].mxu0 %v569
        %v948 = vpop.f32.mrb[0].mxu0
        %v949 = vadd.f32 %v624, %v948
        %v950 = vpop.f32.mrb[0].mxu0
        %v951 = vadd.f32 %v628, %v950
        %v952 = vpop.f32.mrb[0].mxu0
        %v953 = vadd.f32 %v624, %v952
        %v954 = vpop.f32.mrb[0].mxu0
        %v955 = vadd.f32 %v628, %v954
        %956 = vmatprep.mubr.bf16.mxu0 0
        %957 = vmatmul.mubr.bf16.gmra.mrb[0].mxu0 %v570
        %v958 = vpop.f32.mrb[0].mxu0
        %v959 = vadd.f32 %v624, %v958
        %v960 = vpop.f32.mrb[0].mxu0
        %v961 = vadd.f32 %v628, %v960
        %v962 = vpop.f32.mrb[0].mxu0
        %v963 = vadd.f32 %v624, %v962
        %v964 = vpop.f32.mrb[0].mxu0
        %v965 = vadd.f32 %v628, %v964
        %966 = vdwg.mxu0
        %967 = vmatprep.subr.bf16.mxu0 %v777
        %968 = vmatpush1.bf16.msra.mxu0 %v776
        %969 = vmatprep.subr.bf16.mxu0 %v782
        %970 = vmatpush1.bf16.msra.mxu0 %v781
        %971 = vmatprep.subr.bf16.mxu0 %v787
        %972 = vmatpush1.bf16.msra.mxu0 %v786
        %973 = vmatprep.subr.bf16.mxu0 %v792
        %974 = vmatpush1.bf16.msra.mxu0 %v791
        %975 = vmatprep.subr.bf16.mxu0 %v797
        %976 = vmatpush1.bf16.msra.mxu0 %v796
        %977 = vmatprep.subr.bf16.mxu0 %v802
        %978 = vmatpush1.bf16.msra.mxu0 %v801
        %979 = vmatprep.subr.bf16.mxu0 %v807
        %980 = vmatpush1.bf16.msra.mxu0 %v806
        %981 = vmatprep.subr.bf16.mxu0 %v812
        %982 = vmatpush1.bf16.msra.mxu0 %v811
        %983 = vmatprep.subr.bf16.mxu0 0
        %984 = vmatpush1.bf16.msra.mxu0 0
        %985 = vmatprep.subr.bf16.mxu0 0
        %986 = vmatpush1.bf16.msra.mxu0 0
        %987 = vmatprep.subr.bf16.mxu0 0
        %988 = vmatpush1.bf16.msra.mxu0 0
        %989 = vmatprep.subr.bf16.mxu0 0
        %990 = vmatpush1.bf16.msra.mxu0 0
        %991 = vmatprep.subr.bf16.mxu0 0
        %992 = vmatpush1.bf16.msra.mxu0 0
        %993 = vmatprep.subr.bf16.mxu0 0
        %994 = vmatpush1.bf16.msra.mxu0 0
        %995 = vmatprep.subr.bf16.mxu0 0
        %996 = vmatpush1.bf16.msra.mxu0 0
        %997 = vmatprep.subr.bf16.mxu0 0
        %998 = vmatpush1.bf16.msra.mxu0 0
        %999 = vmatprep.mubr.bf16.mxu0 0
        %1000 = vmatmul.mubr.bf16.gmra.mrb[0].mxu0 %v563
        %v1001 = vpop.f32.mrb[0].mxu0
        %v1002 = vadd.f32 %v632, %v1001
        %v1003 = vpop.f32.mrb[0].mxu0
        %v1004 = vadd.f32 %v636, %v1003
        %v1005 = vpop.f32.mrb[0].mxu0
        %v1006 = vadd.f32 %v632, %v1005
        %v1007 = vpop.f32.mrb[0].mxu0
        %v1008 = vadd.f32 %v636, %v1007
        %1009 = vmatprep.mubr.bf16.mxu0 0
        %1010 = vmatmul.mubr.bf16.gmra.mrb[0].mxu0 %v564
        %v1011 = vpop.f32.mrb[0].mxu0
        %v1012 = vadd.f32 %v632, %v1011
        %v1013 = vpop.f32.mrb[0].mxu0
        %v1014 = vadd.f32 %v636, %v1013
        %v1015 = vpop.f32.mrb[0].mxu0
        %v1016 = vadd.f32 %v632, %v1015
        %v1017 = vpop.f32.mrb[0].mxu0
        %v1018 = vadd.f32 %v636, %v1017
        %1019 = vmatprep.mubr.bf16.mxu0 0
        %1020 = vmatmul.mubr.bf16.gmra.mrb[0].mxu0 %v565
        %v1021 = vpop.f32.mrb[0].mxu0
        %v1022 = vadd.f32 %v632, %v1021
        %v1023 = vpop.f32.mrb[0].mxu0
        %v1024 = vadd.f32 %v636, %v1023
        %v1025 = vpop.f32.mrb[0].mxu0
        %v1026 = vadd.f32 %v632, %v1025
        %v1027 = vpop.f32.mrb[0].mxu0
        %v1028 = vadd.f32 %v636, %v1027
        %1029 = vmatprep.mubr.bf16.mxu0 0
        %1030 = vmatmul.mubr.bf16.gmra.mrb[0].mxu0 %v566
        %v1031 = vpop.f32.mrb[0].mxu0
        %v1032 = vadd.f32 %v632, %v1031
        %v1033 = vpop.f32.mrb[0].mxu0
        %v1034 = vadd.f32 %v636, %v1033
        %v1035 = vpop.f32.mrb[0].mxu0
        %v1036 = vadd.f32 %v632, %v1035
        %v1037 = vpop.f32.mrb[0].mxu0
        %v1038 = vadd.f32 %v636, %v1037
        %1039 = vmatprep.mubr.bf16.mxu0 0
        %1040 = vmatmul.mubr.bf16.gmra.mrb[0].mxu0 %v567
        %v1041 = vpop.f32.mrb[0].mxu0
        %v1042 = vadd.f32 %v632, %v1041
        %v1043 = vpop.f32.mrb[0].mxu0
        %v1044 = vadd.f32 %v636, %v1043
        %v1045 = vpop.f32.mrb[0].mxu0
        %v1046 = vadd.f32 %v632, %v1045
        %v1047 = vpop.f32.mrb[0].mxu0
        %v1048 = vadd.f32 %v636, %v1047
        %1049 = vmatprep.mubr.bf16.mxu0 0
        %1050 = vmatmul.mubr.bf16.gmra.mrb[0].mxu0 %v568
        %v1051 = vpop.f32.mrb[0].mxu0
        %v1052 = vadd.f32 %v632, %v1051
        %v1053 = vpop.f32.mrb[0].mxu0
        %v1054 = vadd.f32 %v636, %v1053
        %v1055 = vpop.f32.mrb[0].mxu0
        %v1056 = vadd.f32 %v632, %v1055
        %v1057 = vpop.f32.mrb[0].mxu0
        %v1058 = vadd.f32 %v636, %v1057
        %1059 = vmatprep.mubr.bf16.mxu0 0
        %1060 = vmatmul.mubr.bf16.gmra.mrb[0].mxu0 %v569
        %v1061 = vpop.f32.mrb[0].mxu0
        %v1062 = vadd.f32 %v632, %v1061
        %v1063 = vpop.f32.mrb[0].mxu0
        %v1064 = vadd.f32 %v636, %v1063
        %v1065 = vpop.f32.mrb[0].mxu0
        %v1066 = vadd.f32 %v632, %v1065
        %v1067 = vpop.f32.mrb[0].mxu0
        %v1068 = vadd.f32 %v636, %v1067
        %1069 = vmatprep.mubr.bf16.mxu0 0
        %1070 = vmatmul.mubr.bf16.gmra.mrb[0].mxu0 %v570
        %v1071 = vpop.f32.mrb[0].mxu0
        %v1072 = vadd.f32 %v632, %v1071
        %v1073 = vpop.f32.mrb[0].mxu0
        %v1074 = vadd.f32 %v636, %v1073
        %v1075 = vpop.f32.mrb[0].mxu0
        %v1076 = vadd.f32 %v632, %v1075
        %v1077 = vpop.f32.mrb[0].mxu0
        %v1078 = vadd.f32 %v636, %v1077
        %1079 = vdwg.mxu0
        %1080 = vmatprep.subr.bf16.mxu0 0
        %1081 = vmatpush1.bf16.msra.mxu0 %v778
        %1082 = vmatprep.subr.bf16.mxu0 0
        %1083 = vmatpush1.bf16.msra.mxu0 %v783
        %1084 = vmatprep.subr.bf16.mxu0 0
        %1085 = vmatpush1.bf16.msra.mxu0 %v788
        %1086 = vmatprep.subr.bf16.mxu0 0
        %1087 = vmatpush1.bf16.msra.mxu0 %v793
        %1088 = vmatprep.subr.bf16.mxu0 0
        %1089 = vmatpush1.bf16.msra.mxu0 %v798
        %1090 = vmatprep.subr.bf16.mxu0 0
        %1091 = vmatpush1.bf16.msra.mxu0 %v803
        %1092 = vmatprep.subr.bf16.mxu0 0
        %1093 = vmatpush1.bf16.msra.mxu0 %v808
        %1094 = vmatprep.subr.bf16.mxu0 0
        %1095 = vmatpush1.bf16.msra.mxu0 %v813
        %1096 = vmatprep.subr.bf16.mxu0 0
        %1097 = vmatpush1.bf16.msra.mxu0 0
        %1098 = vmatprep.subr.bf16.mxu0 0
        %1099 = vmatpush1.bf16.msra.mxu0 0
        %1100 = vmatprep.subr.bf16.mxu0 0
        %1101 = vmatpush1.bf16.msra.mxu0 0
        %1102 = vmatprep.subr.bf16.mxu0 0
        %1103 = vmatpush1.bf16.msra.mxu0 0
        %1104 = vmatprep.subr.bf16.mxu0 0
        %1105 = vmatpush1.bf16.msra.mxu0 0
        %1106 = vmatprep.subr.bf16.mxu0 0
        %1107 = vmatpush1.bf16.msra.mxu0 0
        %1108 = vmatprep.subr.bf16.mxu0 0
        %1109 = vmatpush1.bf16.msra.mxu0 0
        %1110 = vmatprep.subr.bf16.mxu0 0
        %1111 = vmatpush1.bf16.msra.mxu0 0
        %1112 = vmatprep.mubr.bf16.mxu0 0
        %1113 = vmatmul.mubr.bf16.gmra.mrb[0].mxu0 %v563
        %v1114 = vpop.f32.mrb[0].mxu0
        %v1115 = vadd.f32 %v640, %v1114
        %v1116 = vpop.f32.mrb[0].mxu0
        %v1117 = vpop.f32.mrb[0].mxu0
        %v1118 = vadd.f32 %v640, %v1117
        %v1119 = vpop.f32.mrb[0].mxu0
        %1120 = vmatprep.mubr.bf16.mxu0 0
        %1121 = vmatmul.mubr.bf16.gmra.mrb[0].mxu0 %v564
        %v1122 = vpop.f32.mrb[0].mxu0
        %v1123 = vadd.f32 %v640, %v1122
        %v1124 = vpop.f32.mrb[0].mxu0
        %v1125 = vpop.f32.mrb[0].mxu0
        %v1126 = vadd.f32 %v640, %v1125
        %v1127 = vpop.f32.mrb[0].mxu0
        %1128 = vmatprep.mubr.bf16.mxu0 0
        %1129 = vmatmul.mubr.bf16.gmra.mrb[0].mxu0 %v565
        %v1130 = vpop.f32.mrb[0].mxu0
        %v1131 = vadd.f32 %v640, %v1130
        %v1132 = vpop.f32.mrb[0].mxu0
        %v1133 = vpop.f32.mrb[0].mxu0
        %v1134 = vadd.f32 %v640, %v1133
        %v1135 = vpop.f32.mrb[0].mxu0
        %1136 = vmatprep.mubr.bf16.mxu0 0
        %1137 = vmatmul.mubr.bf16.gmra.mrb[0].mxu0 %v566
        %v1138 = vpop.f32.mrb[0].mxu0
        %v1139 = vadd.f32 %v640, %v1138
        %v1140 = vpop.f32.mrb[0].mxu0
        %v1141 = vpop.f32.mrb[0].mxu0
        %v1142 = vadd.f32 %v640, %v1141
        %v1143 = vpop.f32.mrb[0].mxu0
        %1144 = vmatprep.mubr.bf16.mxu0 0
        %1145 = vmatmul.mubr.bf16.gmra.mrb[0].mxu0 %v567
        %v1146 = vpop.f32.mrb[0].mxu0
        %v1147 = vadd.f32 %v640, %v1146
        %v1148 = vpop.f32.mrb[0].mxu0
        %v1149 = vpop.f32.mrb[0].mxu0
        %v1150 = vadd.f32 %v640, %v1149
        %v1151 = vpop.f32.mrb[0].mxu0
        %1152 = vmatprep.mubr.bf16.mxu0 0
        %1153 = vmatmul.mubr.bf16.gmra.mrb[0].mxu0 %v568
        %v1154 = vpop.f32.mrb[0].mxu0
        %v1155 = vadd.f32 %v640, %v1154
        %v1156 = vpop.f32.mrb[0].mxu0
        %v1157 = vpop.f32.mrb[0].mxu0
        %v1158 = vadd.f32 %v640, %v1157
        %v1159 = vpop.f32.mrb[0].mxu0
        %1160 = vmatprep.mubr.bf16.mxu0 0
        %1161 = vmatmul.mubr.bf16.gmra.mrb[0].mxu0 %v569
        %v1162 = vpop.f32.mrb[0].mxu0
        %v1163 = vadd.f32 %v640, %v1162
        %v1164 = vpop.f32.mrb[0].mxu0
        %v1165 = vpop.f32.mrb[0].mxu0
        %v1166 = vadd.f32 %v640, %v1165
        %v1167 = vpop.f32.mrb[0].mxu0
        %1168 = vmatprep.mubr.bf16.mxu0 0
        %1169 = vmatmul.mubr.bf16.gmra.mrb[0].mxu0 %v570
        %v1170 = vpop.f32.mrb[0].mxu0
        %v1171 = vadd.f32 %v640, %v1170
        %v1172 = vpop.f32.mrb[0].mxu0
        %v1173 = vpop.f32.mrb[0].mxu0
        %v1174 = vadd.f32 %v640, %v1173
        %v1175 = vpop.f32.mrb[0].mxu0
        %1176 = vdwg.mxu0
        %v1177 = vxor.u32 %v889, 2147483648
        %v1178 = vxor.u32 %v891, 2147483648
        %v1179 = vxor.u32 %v1002, 2147483648
        %v1180 = vxor.u32 %v1004, 2147483648
        %v1181 = vxor.u32 %v1115, 2147483648
        %v1182 = vxor.u32 %v893, 2147483648
        %v1183 = vxor.u32 %v895, 2147483648
        %v1184 = vxor.u32 %v1006, 2147483648
        %v1185 = vxor.u32 %v1008, 2147483648
        %v1186 = vxor.u32 %v1118, 2147483648
        %v1187 = vxor.u32 %v899, 2147483648
        %v1188 = vxor.u32 %v901, 2147483648
        %v1189 = vxor.u32 %v1012, 2147483648
        %v1190 = vxor.u32 %v1014, 2147483648
        %v1191 = vxor.u32 %v1123, 2147483648
        %v1192 = vxor.u32 %v903, 2147483648
        %v1193 = vxor.u32 %v905, 2147483648
        %v1194 = vxor.u32 %v1016, 2147483648
        %v1195 = vxor.u32 %v1018, 2147483648
        %v1196 = vxor.u32 %v1126, 2147483648
        %v1197 = vxor.u32 %v909, 2147483648
        %v1198 = vxor.u32 %v911, 2147483648
        %v1199 = vxor.u32 %v1022, 2147483648
        %v1200 = vxor.u32 %v1024, 2147483648
        %v1201 = vxor.u32 %v1131, 2147483648
        %v1202 = vxor.u32 %v913, 2147483648
        %v1203 = vxor.u32 %v915, 2147483648
        %v1204 = vxor.u32 %v1026, 2147483648
        %v1205 = vxor.u32 %v1028, 2147483648
        %v1206 = vxor.u32 %v1134, 2147483648
        %v1207 = vxor.u32 %v919, 2147483648
        %v1208 = vxor.u32 %v921, 2147483648
        %v1209 = vxor.u32 %v1032, 2147483648
        %v1210 = vxor.u32 %v1034, 2147483648
        %v1211 = vxor.u32 %v1139, 2147483648
        %v1212 = vxor.u32 %v923, 2147483648
        %v1213 = vxor.u32 %v925, 2147483648
        %v1214 = vxor.u32 %v1036, 2147483648
        %v1215 = vxor.u32 %v1038, 2147483648
        %v1216 = vxor.u32 %v1142, 2147483648
        %v1217 = vxor.u32 %v929, 2147483648
        %v1218 = vxor.u32 %v931, 2147483648
        %v1219 = vxor.u32 %v1042, 2147483648
        %v1220 = vxor.u32 %v1044, 2147483648
        %v1221 = vxor.u32 %v1147, 2147483648
        %v1222 = vxor.u32 %v933, 2147483648
        %v1223 = vxor.u32 %v935, 2147483648
        %v1224 = vxor.u32 %v1046, 2147483648
        %v1225 = vxor.u32 %v1048, 2147483648
        %v1226 = vxor.u32 %v1150, 2147483648
        %v1227 = vxor.u32 %v939, 2147483648
        %v1228 = vxor.u32 %v941, 2147483648
        %v1229 = vxor.u32 %v1052, 2147483648
        %v1230 = vxor.u32 %v1054, 2147483648
        %v1231 = vxor.u32 %v1155, 2147483648
        %v1232 = vxor.u32 %v943, 2147483648
        %v1233 = vxor.u32 %v945, 2147483648
        %v1234 = vxor.u32 %v1056, 2147483648
        %v1235 = vxor.u32 %v1058, 2147483648
        %v1236 = vxor.u32 %v1158, 2147483648
        %v1237 = vxor.u32 %v949, 2147483648
        %v1238 = vxor.u32 %v951, 2147483648
        %v1239 = vxor.u32 %v1062, 2147483648
        %v1240 = vxor.u32 %v1064, 2147483648
        %v1241 = vxor.u32 %v1163, 2147483648
        %v1242 = vxor.u32 %v953, 2147483648
        %v1243 = vxor.u32 %v955, 2147483648
        %v1244 = vxor.u32 %v1066, 2147483648
        %v1245 = vxor.u32 %v1068, 2147483648
        %v1246 = vxor.u32 %v1166, 2147483648
        %v1247 = vxor.u32 %v959, 2147483648
        %v1248 = vxor.u32 %v961, 2147483648
        %v1249 = vxor.u32 %v1072, 2147483648
        %v1250 = vxor.u32 %v1074, 2147483648
        %v1251 = vxor.u32 %v1171, 2147483648
        %v1252 = vxor.u32 %v963, 2147483648
        %v1253 = vxor.u32 %v965, 2147483648
        %v1254 = vxor.u32 %v1076, 2147483648
        %v1255 = vxor.u32 %v1078, 2147483648
        %v1256 = vxor.u32 %v1174, 2147483648
        %v1257 = vmul.f32 %v1177, 1.442695
        %v1258 = vpow.pop %v1257
        %v1259 = vmul.f32 %v1178, 1.442695
        %v1260 = vpow.pop %v1259
        %v1261 = vmul.f32 %v1179, 1.442695
        %v1262 = vpow.pop %v1261
        %v1263 = vmul.f32 %v1180, 1.442695
        %v1264 = vpow.pop %v1263
        %v1265 = vmul.f32 %v1181, 1.442695
        %v1266 = vpow.pop %v1265
        %v1267 = vmul.f32 %v1182, 1.442695
        %v1268 = vpow.pop %v1267
        %v1269 = vmul.f32 %v1183, 1.442695
        %v1270 = vpow.pop %v1269
        %v1271 = vmul.f32 %v1184, 1.442695
        %v1272 = vpow.pop %v1271
        %v1273 = vmul.f32 %v1185, 1.442695
        %v1274 = vpow.pop %v1273
        %v1275 = vmul.f32 %v1186, 1.442695
        %v1276 = vpow.pop %v1275
        %v1277 = vmul.f32 %v1187, 1.442695
        %v1278 = vpow.pop %v1277
        %v1279 = vmul.f32 %v1188, 1.442695
        %v1280 = vpow.pop %v1279
        %v1281 = vmul.f32 %v1189, 1.442695
        %v1282 = vpow.pop %v1281
        %v1283 = vmul.f32 %v1190, 1.442695
        %v1284 = vpow.pop %v1283
        %v1285 = vmul.f32 %v1191, 1.442695
        %v1286 = vpow.pop %v1285
        %v1287 = vmul.f32 %v1192, 1.442695
        %v1288 = vpow.pop %v1287
        %v1289 = vmul.f32 %v1193, 1.442695
        %v1290 = vpow.pop %v1289
        %v1291 = vmul.f32 %v1194, 1.442695
        %v1292 = vpow.pop %v1291
        %v1293 = vmul.f32 %v1195, 1.442695
        %v1294 = vpow.pop %v1293
        %v1295 = vmul.f32 %v1196, 1.442695
        %v1296 = vpow.pop %v1295
        %v1297 = vmul.f32 %v1197, 1.442695
        %v1298 = vpow.pop %v1297
        %v1299 = vmul.f32 %v1198, 1.442695
        %v1300 = vpow.pop %v1299
        %v1301 = vmul.f32 %v1199, 1.442695
        %v1302 = vpow.pop %v1301
        %v1303 = vmul.f32 %v1200, 1.442695
        %v1304 = vpow.pop %v1303
        %v1305 = vmul.f32 %v1201, 1.442695
        %v1306 = vpow.pop %v1305
        %v1307 = vmul.f32 %v1202, 1.442695
        %v1308 = vpow.pop %v1307
        %v1309 = vmul.f32 %v1203, 1.442695
        %v1310 = vpow.pop %v1309
        %v1311 = vmul.f32 %v1204, 1.442695
        %v1312 = vpow.pop %v1311
        %v1313 = vmul.f32 %v1205, 1.442695
        %v1314 = vpow.pop %v1313
        %v1315 = vmul.f32 %v1206, 1.442695
        %v1316 = vpow.pop %v1315
        %v1317 = vmul.f32 %v1207, 1.442695
        %v1318 = vpow.pop %v1317
        %v1319 = vmul.f32 %v1208, 1.442695
        %v1320 = vpow.pop %v1319
        %v1321 = vmul.f32 %v1209, 1.442695
        %v1322 = vpow.pop %v1321
        %v1323 = vmul.f32 %v1210, 1.442695
        %v1324 = vpow.pop %v1323
        %v1325 = vmul.f32 %v1211, 1.442695
        %v1326 = vpow.pop %v1325
        %v1327 = vmul.f32 %v1212, 1.442695
        %v1328 = vpow.pop %v1327
        %v1329 = vmul.f32 %v1213, 1.442695
        %v1330 = vpow.pop %v1329
        %v1331 = vmul.f32 %v1214, 1.442695
        %v1332 = vpow.pop %v1331
        %v1333 = vmul.f32 %v1215, 1.442695
        %v1334 = vpow.pop %v1333
        %v1335 = vmul.f32 %v1216, 1.442695
        %v1336 = vpow.pop %v1335
        %v1337 = vmul.f32 %v1217, 1.442695
        %v1338 = vpow.pop %v1337
        %v1339 = vmul.f32 %v1218, 1.442695
        %v1340 = vpow.pop %v1339
        %v1341 = vmul.f32 %v1219, 1.442695
        %v1342 = vpow.pop %v1341
        %v1343 = vmul.f32 %v1220, 1.442695
        %v1344 = vpow.pop %v1343
        %v1345 = vmul.f32 %v1221, 1.442695
        %v1346 = vpow.pop %v1345
        %v1347 = vmul.f32 %v1222, 1.442695
        %v1348 = vpow.pop %v1347
        %v1349 = vmul.f32 %v1223, 1.442695
        %v1350 = vpow.pop %v1349
        %v1351 = vmul.f32 %v1224, 1.442695
        %v1352 = vpow.pop %v1351
        %v1353 = vmul.f32 %v1225, 1.442695
        %v1354 = vpow.pop %v1353
        %v1355 = vmul.f32 %v1226, 1.442695
        %v1356 = vpow.pop %v1355
        %v1357 = vmul.f32 %v1227, 1.442695
        %v1358 = vpow.pop %v1357
        %v1359 = vmul.f32 %v1228, 1.442695
        %v1360 = vpow.pop %v1359
        %v1361 = vmul.f32 %v1229, 1.442695
        %v1362 = vpow.pop %v1361
        %v1363 = vmul.f32 %v1230, 1.442695
        %v1364 = vpow.pop %v1363
        %v1365 = vmul.f32 %v1231, 1.442695
        %v1366 = vpow.pop %v1365
        %v1367 = vmul.f32 %v1232, 1.442695
        %v1368 = vpow.pop %v1367
        %v1369 = vmul.f32 %v1233, 1.442695
        %v1370 = vpow.pop %v1369
        %v1371 = vmul.f32 %v1234, 1.442695
        %v1372 = vpow.pop %v1371
        %v1373 = vmul.f32 %v1235, 1.442695
        %v1374 = vpow.pop %v1373
        %v1375 = vmul.f32 %v1236, 1.442695
        %v1376 = vpow.pop %v1375
        %v1377 = vmul.f32 %v1237, 1.442695
        %v1378 = vpow.pop %v1377
        %v1379 = vmul.f32 %v1238, 1.442695
        %v1380 = vpow.pop %v1379
        %v1381 = vmul.f32 %v1239, 1.442695
        %v1382 = vpow.pop %v1381
        %v1383 = vmul.f32 %v1240, 1.442695
        %v1384 = vpow.pop %v1383
        %v1385 = vmul.f32 %v1241, 1.442695
        %v1386 = vpow.pop %v1385
        %v1387 = vmul.f32 %v1242, 1.442695
        %v1388 = vpow.pop %v1387
        %v1389 = vmul.f32 %v1243, 1.442695
        %v1390 = vpow.pop %v1389
        %v1391 = vmul.f32 %v1244, 1.442695
        %v1392 = vpow.pop %v1391
        %v1393 = vmul.f32 %v1245, 1.442695
        %v1394 = vpow.pop %v1393
        %v1395 = vmul.f32 %v1246, 1.442695
        %v1396 = vpow.pop %v1395
        %v1397 = vmul.f32 %v1247, 1.442695
        %v1398 = vpow.pop %v1397
        %v1399 = vmul.f32 %v1248, 1.442695
        %v1400 = vpow.pop %v1399
        %v1401 = vmul.f32 %v1249, 1.442695
        %v1402 = vpow.pop %v1401
        %v1403 = vmul.f32 %v1250, 1.442695
        %v1404 = vpow.pop %v1403
        %v1405 = vmul.f32 %v1251, 1.442695
        %v1406 = vpow.pop %v1405
        %v1407 = vmul.f32 %v1252, 1.442695
        %v1408 = vpow.pop %v1407
        %v1409 = vmul.f32 %v1253, 1.442695
        %v1410 = vpow.pop %v1409
        %v1411 = vmul.f32 %v1254, 1.442695
        %v1412 = vpow.pop %v1411
        %v1413 = vmul.f32 %v1255, 1.442695
        %v1414 = vpow.pop %v1413
        %v1415 = vmul.f32 %v1256, 1.442695
        %v1416 = vpow.pop %v1415
        %v1417 = vadd.f32 %v1258, 1.0
        %v1418 = vadd.f32 %v1260, 1.0
        %v1419 = vadd.f32 %v1262, 1.0
        %v1420 = vadd.f32 %v1264, 1.0
        %v1421 = vadd.f32 %v1266, 1.0
        %v1422 = vadd.f32 %v1268, 1.0
        %v1423 = vadd.f32 %v1270, 1.0
        %v1424 = vadd.f32 %v1272, 1.0
        %v1425 = vadd.f32 %v1274, 1.0
        %v1426 = vadd.f32 %v1276, 1.0
        %v1427 = vadd.f32 %v1278, 1.0
        %v1428 = vadd.f32 %v1280, 1.0
        %v1429 = vadd.f32 %v1282, 1.0
        %v1430 = vadd.f32 %v1284, 1.0
        %v1431 = vadd.f32 %v1286, 1.0
        %v1432 = vadd.f32 %v1288, 1.0
        %v1433 = vadd.f32 %v1290, 1.0
        %v1434 = vadd.f32 %v1292, 1.0
        %v1435 = vadd.f32 %v1294, 1.0
        %v1436 = vadd.f32 %v1296, 1.0
        %v1437 = vadd.f32 %v1298, 1.0
        %v1438 = vadd.f32 %v1300, 1.0
        %v1439 = vadd.f32 %v1302, 1.0
        %v1440 = vadd.f32 %v1304, 1.0
        %v1441 = vadd.f32 %v1306, 1.0
        %v1442 = vadd.f32 %v1308, 1.0
        %v1443 = vadd.f32 %v1310, 1.0
        %v1444 = vadd.f32 %v1312, 1.0
        %v1445 = vadd.f32 %v1314, 1.0
        %v1446 = vadd.f32 %v1316, 1.0
        %v1447 = vadd.f32 %v1318, 1.0
        %v1448 = vadd.f32 %v1320, 1.0
        %v1449 = vadd.f32 %v1322, 1.0
        %v1450 = vadd.f32 %v1324, 1.0
        %v1451 = vadd.f32 %v1326, 1.0
        %v1452 = vadd.f32 %v1328, 1.0
        %v1453 = vadd.f32 %v1330, 1.0
        %v1454 = vadd.f32 %v1332, 1.0
        %v1455 = vadd.f32 %v1334, 1.0
        %v1456 = vadd.f32 %v1336, 1.0
        %v1457 = vadd.f32 %v1338, 1.0
        %v1458 = vadd.f32 %v1340, 1.0
        %v1459 = vadd.f32 %v1342, 1.0
        %v1460 = vadd.f32 %v1344, 1.0
        %v1461 = vadd.f32 %v1346, 1.0
        %v1462 = vadd.f32 %v1348, 1.0
        %v1463 = vadd.f32 %v1350, 1.0
        %v1464 = vadd.f32 %v1352, 1.0
        %v1465 = vadd.f32 %v1354, 1.0
        %v1466 = vadd.f32 %v1356, 1.0
        %v1467 = vadd.f32 %v1358, 1.0
        %v1468 = vadd.f32 %v1360, 1.0
        %v1469 = vadd.f32 %v1362, 1.0
        %v1470 = vadd.f32 %v1364, 1.0
        %v1471 = vadd.f32 %v1366, 1.0
        %v1472 = vadd.f32 %v1368, 1.0
        %v1473 = vadd.f32 %v1370, 1.0
        %v1474 = vadd.f32 %v1372, 1.0
        %v1475 = vadd.f32 %v1374, 1.0
        %v1476 = vadd.f32 %v1376, 1.0
        %v1477 = vadd.f32 %v1378, 1.0
        %v1478 = vadd.f32 %v1380, 1.0
        %v1479 = vadd.f32 %v1382, 1.0
        %v1480 = vadd.f32 %v1384, 1.0
        %v1481 = vadd.f32 %v1386, 1.0
        %v1482 = vadd.f32 %v1388, 1.0
        %v1483 = vadd.f32 %v1390, 1.0
        %v1484 = vadd.f32 %v1392, 1.0
        %v1485 = vadd.f32 %v1394, 1.0
        %v1486 = vadd.f32 %v1396, 1.0
        %v1487 = vadd.f32 %v1398, 1.0
        %v1488 = vadd.f32 %v1400, 1.0
        %v1489 = vadd.f32 %v1402, 1.0
        %v1490 = vadd.f32 %v1404, 1.0
        %v1491 = vadd.f32 %v1406, 1.0
        %v1492 = vadd.f32 %v1408, 1.0
        %v1493 = vadd.f32 %v1410, 1.0
        %v1494 = vadd.f32 %v1412, 1.0
        %v1495 = vadd.f32 %v1414, 1.0
        %v1496 = vadd.f32 %v1416, 1.0
        %v1497 = vrcp.pop %v1417
        %v1498 = vmul.f32 1.0, %v1497
        %v1499 = vrcp.pop %v1418
        %v1500 = vmul.f32 1.0, %v1499
        %v1501 = vrcp.pop %v1419
        %v1502 = vmul.f32 1.0, %v1501
        %v1503 = vrcp.pop %v1420
        %v1504 = vmul.f32 1.0, %v1503
        %v1505 = vrcp.pop %v1421
        %v1506 = vmul.f32 1.0, %v1505
        %v1507 = vrcp.pop %v1422
        %v1508 = vmul.f32 1.0, %v1507
        %v1509 = vrcp.pop %v1423
        %v1510 = vmul.f32 1.0, %v1509
        %v1511 = vrcp.pop %v1424
        %v1512 = vmul.f32 1.0, %v1511
        %v1513 = vrcp.pop %v1425
        %v1514 = vmul.f32 1.0, %v1513
        %v1515 = vrcp.pop %v1426
        %v1516 = vmul.f32 1.0, %v1515
        %v1517 = vrcp.pop %v1427
        %v1518 = vmul.f32 1.0, %v1517
        %v1519 = vrcp.pop %v1428
        %v1520 = vmul.f32 1.0, %v1519
        %v1521 = vrcp.pop %v1429
        %v1522 = vmul.f32 1.0, %v1521
        %v1523 = vrcp.pop %v1430
        %v1524 = vmul.f32 1.0, %v1523
        %v1525 = vrcp.pop %v1431
        %v1526 = vmul.f32 1.0, %v1525
        %v1527 = vrcp.pop %v1432
        %v1528 = vmul.f32 1.0, %v1527
        %v1529 = vrcp.pop %v1433
        %v1530 = vmul.f32 1.0, %v1529
        %v1531 = vrcp.pop %v1434
        %v1532 = vmul.f32 1.0, %v1531
        %v1533 = vrcp.pop %v1435
        %v1534 = vmul.f32 1.0, %v1533
        %v1535 = vrcp.pop %v1436
        %v1536 = vmul.f32 1.0, %v1535
        %v1537 = vrcp.pop %v1437
        %v1538 = vmul.f32 1.0, %v1537
        %v1539 = vrcp.pop %v1438
        %v1540 = vmul.f32 1.0, %v1539
        %v1541 = vrcp.pop %v1439
        %v1542 = vmul.f32 1.0, %v1541
        %v1543 = vrcp.pop %v1440
        %v1544 = vmul.f32 1.0, %v1543
        %v1545 = vrcp.pop %v1441
        %v1546 = vmul.f32 1.0, %v1545
        %v1547 = vrcp.pop %v1442
        %v1548 = vmul.f32 1.0, %v1547
        %v1549 = vrcp.pop %v1443
        %v1550 = vmul.f32 1.0, %v1549
        %v1551 = vrcp.pop %v1444
        %v1552 = vmul.f32 1.0, %v1551
        %v1553 = vrcp.pop %v1445
        %v1554 = vmul.f32 1.0, %v1553
        %v1555 = vrcp.pop %v1446
        %v1556 = vmul.f32 1.0, %v1555
        %v1557 = vrcp.pop %v1447
        %v1558 = vmul.f32 1.0, %v1557
        %v1559 = vrcp.pop %v1448
        %v1560 = vmul.f32 1.0, %v1559
        %v1561 = vrcp.pop %v1449
        %v1562 = vmul.f32 1.0, %v1561
        %v1563 = vrcp.pop %v1450
        %v1564 = vmul.f32 1.0, %v1563
        %v1565 = vrcp.pop %v1451
        %v1566 = vmul.f32 1.0, %v1565
        %v1567 = vrcp.pop %v1452
        %v1568 = vmul.f32 1.0, %v1567
        %v1569 = vrcp.pop %v1453
        %v1570 = vmul.f32 1.0, %v1569
        %v1571 = vrcp.pop %v1454
        %v1572 = vmul.f32 1.0, %v1571
        %v1573 = vrcp.pop %v1455
        %v1574 = vmul.f32 1.0, %v1573
        %v1575 = vrcp.pop %v1456
        %v1576 = vmul.f32 1.0, %v1575
        %v1577 = vrcp.pop %v1457
        %v1578 = vmul.f32 1.0, %v1577
        %v1579 = vrcp.pop %v1458
        %v1580 = vmul.f32 1.0, %v1579
        %v1581 = vrcp.pop %v1459
        %v1582 = vmul.f32 1.0, %v1581
        %v1583 = vrcp.pop %v1460
        %v1584 = vmul.f32 1.0, %v1583
        %v1585 = vrcp.pop %v1461
        %v1586 = vmul.f32 1.0, %v1585
        %v1587 = vrcp.pop %v1462
        %v1588 = vmul.f32 1.0, %v1587
        %v1589 = vrcp.pop %v1463
        %v1590 = vmul.f32 1.0, %v1589
        %v1591 = vrcp.pop %v1464
        %v1592 = vmul.f32 1.0, %v1591
        %v1593 = vrcp.pop %v1465
        %v1594 = vmul.f32 1.0, %v1593
        %v1595 = vrcp.pop %v1466
        %v1596 = vmul.f32 1.0, %v1595
        %v1597 = vrcp.pop %v1467
        %v1598 = vmul.f32 1.0, %v1597
        %v1599 = vrcp.pop %v1468
        %v1600 = vmul.f32 1.0, %v1599
        %v1601 = vrcp.pop %v1469
        %v1602 = vmul.f32 1.0, %v1601
        %v1603 = vrcp.pop %v1470
        %v1604 = vmul.f32 1.0, %v1603
        %v1605 = vrcp.pop %v1471
        %v1606 = vmul.f32 1.0, %v1605
        %v1607 = vrcp.pop %v1472
        %v1608 = vmul.f32 1.0, %v1607
        %v1609 = vrcp.pop %v1473
        %v1610 = vmul.f32 1.0, %v1609
        %v1611 = vrcp.pop %v1474
        %v1612 = vmul.f32 1.0, %v1611
        %v1613 = vrcp.pop %v1475
        %v1614 = vmul.f32 1.0, %v1613
        %v1615 = vrcp.pop %v1476
        %v1616 = vmul.f32 1.0, %v1615
        %v1617 = vrcp.pop %v1477
        %v1618 = vmul.f32 1.0, %v1617
        %v1619 = vrcp.pop %v1478
        %v1620 = vmul.f32 1.0, %v1619
        %v1621 = vrcp.pop %v1479
        %v1622 = vmul.f32 1.0, %v1621
        %v1623 = vrcp.pop %v1480
        %v1624 = vmul.f32 1.0, %v1623
        %v1625 = vrcp.pop %v1481
        %v1626 = vmul.f32 1.0, %v1625
        %v1627 = vrcp.pop %v1482
        %v1628 = vmul.f32 1.0, %v1627
        %v1629 = vrcp.pop %v1483
        %v1630 = vmul.f32 1.0, %v1629
        %v1631 = vrcp.pop %v1484
        %v1632 = vmul.f32 1.0, %v1631
        %v1633 = vrcp.pop %v1485
        %v1634 = vmul.f32 1.0, %v1633
        %v1635 = vrcp.pop %v1486
        %v1636 = vmul.f32 1.0, %v1635
        %v1637 = vrcp.pop %v1487
        %v1638 = vmul.f32 1.0, %v1637
        %v1639 = vrcp.pop %v1488
        %v1640 = vmul.f32 1.0, %v1639
        %v1641 = vrcp.pop %v1489
        %v1642 = vmul.f32 1.0, %v1641
        %v1643 = vrcp.pop %v1490
        %v1644 = vmul.f32 1.0, %v1643
        %v1645 = vrcp.pop %v1491
        %v1646 = vmul.f32 1.0, %v1645
        %v1647 = vrcp.pop %v1492
        %v1648 = vmul.f32 1.0, %v1647
        %v1649 = vrcp.pop %v1493
        %v1650 = vmul.f32 1.0, %v1649
        %v1651 = vrcp.pop %v1494
        %v1652 = vmul.f32 1.0, %v1651
        %v1653 = vrcp.pop %v1495
        %v1654 = vmul.f32 1.0, %v1653
        %v1655 = vrcp.pop %v1496
        %v1656 = vmul.f32 1.0, %v1655
        %v1657 = vmul.f32 %v889, %v1498
        %v1658 = vmul.f32 %v891, %v1500
        %v1659 = vmul.f32 %v1002, %v1502
        %v1660 = vmul.f32 %v1004, %v1504
        %v1661 = vmul.f32 %v1115, %v1506
        %v1662 = vmul.f32 %v893, %v1508
        %v1663 = vmul.f32 %v895, %v1510
        %v1664 = vmul.f32 %v1006, %v1512
        %v1665 = vmul.f32 %v1008, %v1514
        %v1666 = vmul.f32 %v1118, %v1516
        %v1667 = vmul.f32 %v899, %v1518
        %v1668 = vmul.f32 %v901, %v1520
        %v1669 = vmul.f32 %v1012, %v1522
        %v1670 = vmul.f32 %v1014, %v1524
        %v1671 = vmul.f32 %v1123, %v1526
        %v1672 = vmul.f32 %v903, %v1528
        %v1673 = vmul.f32 %v905, %v1530
        %v1674 = vmul.f32 %v1016, %v1532
        %v1675 = vmul.f32 %v1018, %v1534
        %v1676 = vmul.f32 %v1126, %v1536
        %v1677 = vmul.f32 %v909, %v1538
        %v1678 = vmul.f32 %v911, %v1540
        %v1679 = vmul.f32 %v1022, %v1542
        %v1680 = vmul.f32 %v1024, %v1544
        %v1681 = vmul.f32 %v1131, %v1546
        %v1682 = vmul.f32 %v913, %v1548
        %v1683 = vmul.f32 %v915, %v1550
        %v1684 = vmul.f32 %v1026, %v1552
        %v1685 = vmul.f32 %v1028, %v1554
        %v1686 = vmul.f32 %v1134, %v1556
        %v1687 = vmul.f32 %v919, %v1558
        %v1688 = vmul.f32 %v921, %v1560
        %v1689 = vmul.f32 %v1032, %v1562
        %v1690 = vmul.f32 %v1034, %v1564
        %v1691 = vmul.f32 %v1139, %v1566
        %v1692 = vmul.f32 %v923, %v1568
        %v1693 = vmul.f32 %v925, %v1570
        %v1694 = vmul.f32 %v1036, %v1572
        %v1695 = vmul.f32 %v1038, %v1574
        %v1696 = vmul.f32 %v1142, %v1576
        %v1697 = vmul.f32 %v929, %v1578
        %v1698 = vmul.f32 %v931, %v1580
        %v1699 = vmul.f32 %v1042, %v1582
        %v1700 = vmul.f32 %v1044, %v1584
        %v1701 = vmul.f32 %v1147, %v1586
        %v1702 = vmul.f32 %v933, %v1588
        %v1703 = vmul.f32 %v935, %v1590
        %v1704 = vmul.f32 %v1046, %v1592
        %v1705 = vmul.f32 %v1048, %v1594
        %v1706 = vmul.f32 %v1150, %v1596
        %v1707 = vmul.f32 %v939, %v1598
        %v1708 = vmul.f32 %v941, %v1600
        %v1709 = vmul.f32 %v1052, %v1602
        %v1710 = vmul.f32 %v1054, %v1604
        %v1711 = vmul.f32 %v1155, %v1606
        %v1712 = vmul.f32 %v943, %v1608
        %v1713 = vmul.f32 %v945, %v1610
        %v1714 = vmul.f32 %v1056, %v1612
        %v1715 = vmul.f32 %v1058, %v1614
        %v1716 = vmul.f32 %v1158, %v1616
        %v1717 = vmul.f32 %v949, %v1618
        %v1718 = vmul.f32 %v951, %v1620
        %v1719 = vmul.f32 %v1062, %v1622
        %v1720 = vmul.f32 %v1064, %v1624
        %v1721 = vmul.f32 %v1163, %v1626
        %v1722 = vmul.f32 %v953, %v1628
        %v1723 = vmul.f32 %v955, %v1630
        %v1724 = vmul.f32 %v1066, %v1632
        %v1725 = vmul.f32 %v1068, %v1634
        %v1726 = vmul.f32 %v1166, %v1636
        %v1727 = vmul.f32 %v959, %v1638
        %v1728 = vmul.f32 %v961, %v1640
        %v1729 = vmul.f32 %v1072, %v1642
        %v1730 = vmul.f32 %v1074, %v1644
        %v1731 = vmul.f32 %v1171, %v1646
        %v1732 = vmul.f32 %v963, %v1648
        %v1733 = vmul.f32 %v965, %v1650
        %v1734 = vmul.f32 %v1076, %v1652
        %v1735 = vmul.f32 %v1078, %v1654
        %v1736 = vmul.f32 %v1174, %v1656
        %v1737 = vpack.c.bf16 %v1662, %v1657
        %v1738 = vpack.c.bf16 %v1663, %v1658
        %v1739 = vpack.c.bf16 %v1672, %v1667
        %v1740 = vpack.c.bf16 %v1673, %v1668
        %v1741 = vpack.c.bf16 %v1682, %v1677
        %v1742 = vpack.c.bf16 %v1683, %v1678
        %v1743 = vpack.c.bf16 %v1692, %v1687
        %v1744 = vpack.c.bf16 %v1693, %v1688
        %v1745 = vpack.c.bf16 %v1702, %v1697
        %v1746 = vpack.c.bf16 %v1703, %v1698
        %v1747 = vpack.c.bf16 %v1712, %v1707
        %v1748 = vpack.c.bf16 %v1713, %v1708
        %v1749 = vpack.c.bf16 %v1722, %v1717
        %v1750 = vpack.c.bf16 %v1723, %v1718
        %v1751 = vpack.c.bf16 %v1732, %v1727
        %v1752 = vpack.c.bf16 %v1733, %v1728
        %v1769 = vunpack.c.l.b16 %v1737
        %v1770 = vunpack.c.l.b16 %v1738
        %v1771 = vunpack.c.h.b16 %v1737
        %v1772 = vunpack.c.h.b16 %v1738
        %v1773 = vunpack.c.l.b16 %v1739
        %v1774 = vunpack.c.l.b16 %v1740
        %v1775 = vunpack.c.h.b16 %v1739
        %v1776 = vunpack.c.h.b16 %v1740
        %v1777 = vunpack.c.l.b16 %v1741
        %v1778 = vunpack.c.l.b16 %v1742
        %v1779 = vunpack.c.h.b16 %v1741
        %v1780 = vunpack.c.h.b16 %v1742
        %v1781 = vunpack.c.l.b16 %v1743
        %v1782 = vunpack.c.l.b16 %v1744
        %v1783 = vunpack.c.h.b16 %v1743
        %v1784 = vunpack.c.h.b16 %v1744
        %v1785 = vunpack.c.l.b16 %v1745
        %v1786 = vunpack.c.l.b16 %v1746
        %v1787 = vunpack.c.h.b16 %v1745
        %v1788 = vunpack.c.h.b16 %v1746
        %v1789 = vunpack.c.l.b16 %v1747
        %v1790 = vunpack.c.l.b16 %v1748
        %v1791 = vunpack.c.h.b16 %v1747
        %v1792 = vunpack.c.h.b16 %v1748
        %v1793 = vunpack.c.l.b16 %v1749
        %v1794 = vunpack.c.l.b16 %v1750
        %v1795 = vunpack.c.h.b16 %v1749
        %v1796 = vunpack.c.h.b16 %v1750
        %v1797 = vunpack.c.l.b16 %v1751
        %v1798 = vunpack.c.l.b16 %v1752
        %v1799 = vunpack.c.h.b16 %v1751
        %v1800 = vunpack.c.h.b16 %v1752
        %v1801 = vpack.c.b16 %v1770, %v1769
        %v1802 = vpack.c.b16 %v1772, %v1771
        %v1803 = vpack.c.b16 %v1774, %v1773
        %v1804 = vpack.c.b16 %v1776, %v1775
        %v1805 = vpack.c.b16 %v1778, %v1777
        %v1806 = vpack.c.b16 %v1780, %v1779
        %v1807 = vpack.c.b16 %v1782, %v1781
        %v1808 = vpack.c.b16 %v1784, %v1783
        %v1809 = vpack.c.b16 %v1786, %v1785
        %v1810 = vpack.c.b16 %v1788, %v1787
        %v1811 = vpack.c.b16 %v1790, %v1789
        %v1812 = vpack.c.b16 %v1792, %v1791
        %v1813 = vpack.c.b16 %v1794, %v1793
        %v1814 = vpack.c.b16 %v1796, %v1795
        %v1815 = vpack.c.b16 %v1798, %v1797
        %v1816 = vpack.c.b16 %v1800, %v1799
        %1833 = vst [vmem:[%s406] sm:$0xff] %v1801
        %1834 = vst [vmem:[%s406 + $0x8] sm:$0xff] %v1802
        %1835 = vst [vmem:[%s406 + $0x10] sm:$0xff] %v1803
        %1836 = vst [vmem:[%s406 + $0x18] sm:$0xff] %v1804
        %1837 = vst [vmem:[%s406 + $0x20] sm:$0xff] %v1805
        %1838 = vst [vmem:[%s406 + $0x28] sm:$0xff] %v1806
        %1839 = vst [vmem:[%s406 + $0x30] sm:$0xff] %v1807
        %1840 = vst [vmem:[%s406 + $0x38] sm:$0xff] %v1808
        %1841 = vst [vmem:[%s406 + $0x40] sm:$0xff] %v1809
        %1842 = vst [vmem:[%s406 + $0x48] sm:$0xff] %v1810
        %1843 = vst [vmem:[%s406 + $0x50] sm:$0xff] %v1811
        %1844 = vst [vmem:[%s406 + $0x58] sm:$0xff] %v1812
        %1845 = vst [vmem:[%s406 + $0x60] sm:$0xff] %v1813
        %1846 = vst [vmem:[%s406 + $0x68] sm:$0xff] %v1814
        %1847 = vst [vmem:[%s406 + $0x70] sm:$0xff] %v1815
        %1848 = vst [vmem:[%s406 + $0x78] sm:$0xff] %v1816
        %v1849 = vpack.c.bf16 %v1664, %v1659
        %v1850 = vpack.c.bf16 %v1665, %v1660
        %v1851 = vpack.c.bf16 %v1674, %v1669
        %v1852 = vpack.c.bf16 %v1675, %v1670
        %v1853 = vpack.c.bf16 %v1684, %v1679
        %v1854 = vpack.c.bf16 %v1685, %v1680
        %v1855 = vpack.c.bf16 %v1694, %v1689
        %v1856 = vpack.c.bf16 %v1695, %v1690
        %v1857 = vpack.c.bf16 %v1704, %v1699
        %v1858 = vpack.c.bf16 %v1705, %v1700
        %v1859 = vpack.c.bf16 %v1714, %v1709
        %v1860 = vpack.c.bf16 %v1715, %v1710
        %v1861 = vpack.c.bf16 %v1724, %v1719
        %v1862 = vpack.c.bf16 %v1725, %v1720
        %v1863 = vpack.c.bf16 %v1734, %v1729
        %v1864 = vpack.c.bf16 %v1735, %v1730
        %v1881 = vunpack.c.l.b16 %v1849
        %v1882 = vunpack.c.l.b16 %v1850
        %v1883 = vunpack.c.h.b16 %v1849
        %v1884 = vunpack.c.h.b16 %v1850
        %v1885 = vunpack.c.l.b16 %v1851
        %v1886 = vunpack.c.l.b16 %v1852
        %v1887 = vunpack.c.h.b16 %v1851
        %v1888 = vunpack.c.h.b16 %v1852
        %v1889 = vunpack.c.l.b16 %v1853
        %v1890 = vunpack.c.l.b16 %v1854
        %v1891 = vunpack.c.h.b16 %v1853
        %v1892 = vunpack.c.h.b16 %v1854
        %v1893 = vunpack.c.l.b16 %v1855
        %v1894 = vunpack.c.l.b16 %v1856
        %v1895 = vunpack.c.h.b16 %v1855
        %v1896 = vunpack.c.h.b16 %v1856
        %v1897 = vunpack.c.l.b16 %v1857
        %v1898 = vunpack.c.l.b16 %v1858
        %v1899 = vunpack.c.h.b16 %v1857
        %v1900 = vunpack.c.h.b16 %v1858
        %v1901 = vunpack.c.l.b16 %v1859
        %v1902 = vunpack.c.l.b16 %v1860
        %v1903 = vunpack.c.h.b16 %v1859
        %v1904 = vunpack.c.h.b16 %v1860
        %v1905 = vunpack.c.l.b16 %v1861
        %v1906 = vunpack.c.l.b16 %v1862
        %v1907 = vunpack.c.h.b16 %v1861
        %v1908 = vunpack.c.h.b16 %v1862
        %v1909 = vunpack.c.l.b16 %v1863
        %v1910 = vunpack.c.l.b16 %v1864
        %v1911 = vunpack.c.h.b16 %v1863
        %v1912 = vunpack.c.h.b16 %v1864
        %v1913 = vpack.c.b16 %v1882, %v1881
        %v1914 = vpack.c.b16 %v1884, %v1883
        %v1915 = vpack.c.b16 %v1886, %v1885
        %v1916 = vpack.c.b16 %v1888, %v1887
        %v1917 = vpack.c.b16 %v1890, %v1889
        %v1918 = vpack.c.b16 %v1892, %v1891
        %v1919 = vpack.c.b16 %v1894, %v1893
        %v1920 = vpack.c.b16 %v1896, %v1895
        %v1921 = vpack.c.b16 %v1898, %v1897
        %v1922 = vpack.c.b16 %v1900, %v1899
        %v1923 = vpack.c.b16 %v1902, %v1901
        %v1924 = vpack.c.b16 %v1904, %v1903
        %v1925 = vpack.c.b16 %v1906, %v1905
        %v1926 = vpack.c.b16 %v1908, %v1907
        %v1927 = vpack.c.b16 %v1910, %v1909
        %v1928 = vpack.c.b16 %v1912, %v1911
        %1945 = vst [vmem:[%s413] sm:$0xff] %v1913
        %1946 = vst [vmem:[%s413 + $0x8] sm:$0xff] %v1914
        %1947 = vst [vmem:[%s413 + $0x10] sm:$0xff] %v1915
        %1948 = vst [vmem:[%s413 + $0x18] sm:$0xff] %v1916
        %1949 = vst [vmem:[%s413 + $0x20] sm:$0xff] %v1917
        %1950 = vst [vmem:[%s413 + $0x28] sm:$0xff] %v1918
        %1951 = vst [vmem:[%s413 + $0x30] sm:$0xff] %v1919
        %1952 = vst [vmem:[%s413 + $0x38] sm:$0xff] %v1920
        %1953 = vst [vmem:[%s413 + $0x40] sm:$0xff] %v1921
        %1954 = vst [vmem:[%s413 + $0x48] sm:$0xff] %v1922
        %1955 = vst [vmem:[%s413 + $0x50] sm:$0xff] %v1923
        %1956 = vst [vmem:[%s413 + $0x58] sm:$0xff] %v1924
        %1957 = vst [vmem:[%s413 + $0x60] sm:$0xff] %v1925
        %1958 = vst [vmem:[%s413 + $0x68] sm:$0xff] %v1926
        %1959 = vst [vmem:[%s413 + $0x70] sm:$0xff] %v1927
        %1960 = vst [vmem:[%s413 + $0x78] sm:$0xff] %v1928
        %v1961 = vld [vmem:[#allocation8] sm:$0x1]
        %v1962 = vlaneseq
        %v1963 = vshrl.u32 %v1962, 7
        %v1964 = vsub.s32 0, %v1963
        %v1965 = vrot.slane %v1961, %v1964
        %v1966 = vmul.f32 %v1661, %v1965
        %v1967 = vmul.f32 %v1666, %v1965
        %v1968 = vmul.f32 %v1671, %v1965
        %v1969 = vmul.f32 %v1676, %v1965
        %v1970 = vmul.f32 %v1681, %v1965
        %v1971 = vmul.f32 %v1686, %v1965
        %v1972 = vmul.f32 %v1691, %v1965
        %v1973 = vmul.f32 %v1696, %v1965
        %v1974 = vmul.f32 %v1701, %v1965
        %v1975 = vmul.f32 %v1706, %v1965
        %v1976 = vmul.f32 %v1711, %v1965
        %v1977 = vmul.f32 %v1716, %v1965
        %v1978 = vmul.f32 %v1721, %v1965
        %v1979 = vmul.f32 %v1726, %v1965
        %v1980 = vmul.f32 %v1731, %v1965
        %v1981 = vmul.f32 %v1736, %v1965
        %v1982 = vld [vmem:[#allocation10] sm:$0x1]
        %v1983 = vlaneseq
        %v1984 = vshrl.u32 %v1983, 7
        %v1985 = vsub.s32 0, %v1984
        %v1986 = vrot.slane %v1982, %v1985
        %v1987 = vadd.f32 %v1966, %v1986
        %v1988 = vadd.f32 %v1967, %v1986
        %v1989 = vadd.f32 %v1968, %v1986
        %v1990 = vadd.f32 %v1969, %v1986
        %v1991 = vadd.f32 %v1970, %v1986
        %v1992 = vadd.f32 %v1971, %v1986
        %v1993 = vadd.f32 %v1972, %v1986
        %v1994 = vadd.f32 %v1973, %v1986
        %v1995 = vadd.f32 %v1974, %v1986
        %v1996 = vadd.f32 %v1975, %v1986
        %v1997 = vadd.f32 %v1976, %v1986
        %v1998 = vadd.f32 %v1977, %v1986
        %v1999 = vadd.f32 %v1978, %v1986
        %v2000 = vadd.f32 %v1979, %v1986
        %v2001 = vadd.f32 %v1980, %v1986
        %v2002 = vadd.f32 %v1981, %v1986
        %v2003 = vpack.c.bf16 %v1988, %v1987
        %v2004 = vpack.c.bf16 %v1990, %v1989
        %v2005 = vpack.c.bf16 %v1992, %v1991
        %v2006 = vpack.c.bf16 %v1994, %v1993
        %v2007 = vpack.c.bf16 %v1996, %v1995
        %v2008 = vpack.c.bf16 %v1998, %v1997
        %v2009 = vpack.c.bf16 %v2000, %v1999
        %v2010 = vpack.c.bf16 %v2002, %v2001
        %v2019 = vunpack.c.l.b16 %v2003
        %v2020 = vunpack.c.h.b16 %v2003
        %v2021 = vunpack.c.l.b16 %v2004
        %v2022 = vunpack.c.h.b16 %v2004
        %v2023 = vunpack.c.l.b16 %v2005
        %v2024 = vunpack.c.h.b16 %v2005
        %v2025 = vunpack.c.l.b16 %v2006
        %v2026 = vunpack.c.h.b16 %v2006
        %v2027 = vunpack.c.l.b16 %v2007
        %v2028 = vunpack.c.h.b16 %v2007
        %v2029 = vunpack.c.l.b16 %v2008
        %v2030 = vunpack.c.h.b16 %v2008
        %v2031 = vunpack.c.l.b16 %v2009
        %v2032 = vunpack.c.h.b16 %v2009
        %v2033 = vunpack.c.l.b16 %v2010
        %v2034 = vunpack.c.h.b16 %v2010
        %v2035 = vpack.c.b16 %v2019, %v2019
        %v2036 = vpack.c.b16 %v2020, %v2020
        %v2037 = vpack.c.b16 %v2021, %v2021
        %v2038 = vpack.c.b16 %v2022, %v2022
        %v2039 = vpack.c.b16 %v2023, %v2023
        %v2040 = vpack.c.b16 %v2024, %v2024
        %v2041 = vpack.c.b16 %v2025, %v2025
        %v2042 = vpack.c.b16 %v2026, %v2026
        %v2043 = vpack.c.b16 %v2027, %v2027
        %v2044 = vpack.c.b16 %v2028, %v2028
        %v2045 = vpack.c.b16 %v2029, %v2029
        %v2046 = vpack.c.b16 %v2030, %v2030
        %v2047 = vpack.c.b16 %v2031, %v2031
        %v2048 = vpack.c.b16 %v2032, %v2032
        %v2049 = vpack.c.b16 %v2033, %v2033
        %v2050 = vpack.c.b16 %v2034, %v2034
        %2067 = vst [vmem:[%s420] sm:$0xf] %v2035
        %2068 = vst [vmem:[%s420 + $0x4] sm:$0xf] %v2036
        %2069 = vst [vmem:[%s420 + $0x8] sm:$0xf] %v2037
        %2070 = vst [vmem:[%s420 + $0xc] sm:$0xf] %v2038
        %2071 = vst [vmem:[%s420 + $0x10] sm:$0xf] %v2039
        %2072 = vst [vmem:[%s420 + $0x14] sm:$0xf] %v2040
        %2073 = vst [vmem:[%s420 + $0x18] sm:$0xf] %v2041
        %2074 = vst [vmem:[%s420 + $0x1c] sm:$0xf] %v2042
        %2075 = vst [vmem:[%s420 + $0x20] sm:$0xf] %v2043
        %2076 = vst [vmem:[%s420 + $0x24] sm:$0xf] %v2044
        %2077 = vst [vmem:[%s420 + $0x28] sm:$0xf] %v2045
        %2078 = vst [vmem:[%s420 + $0x2c] sm:$0xf] %v2046
        %2079 = vst [vmem:[%s420 + $0x30] sm:$0xf] %v2047
        %2080 = vst [vmem:[%s420 + $0x34] sm:$0xf] %v2048
        %2081 = vst [vmem:[%s420 + $0x38] sm:$0xf] %v2049
        %2082 = vst [vmem:[%s420 + $0x3c] sm:$0xf] %v2050
        %v2083 = vld [vmem:[#allocation8 + $0x1] sm:$0x1]
        %v2084 = vlaneseq
        %v2085 = vshrl.u32 %v2084, 7
        %v2086 = vsub.s32 0, %v2085
        %v2087 = vrot.slane %v2083, %v2086
        %v2088 = vmul.f32 %v1661, %v2087
        %v2089 = vmul.f32 %v1666, %v2087
        %v2090 = vmul.f32 %v1671, %v2087
        %v2091 = vmul.f32 %v1676, %v2087
        %v2092 = vmul.f32 %v1681, %v2087
        %v2093 = vmul.f32 %v1686, %v2087
        %v2094 = vmul.f32 %v1691, %v2087
        %v2095 = vmul.f32 %v1696, %v2087
        %v2096 = vmul.f32 %v1701, %v2087
        %v2097 = vmul.f32 %v1706, %v2087
        %v2098 = vmul.f32 %v1711, %v2087
        %v2099 = vmul.f32 %v1716, %v2087
        %v2100 = vmul.f32 %v1721, %v2087
        %v2101 = vmul.f32 %v1726, %v2087
        %v2102 = vmul.f32 %v1731, %v2087
        %v2103 = vmul.f32 %v1736, %v2087
        %v2104 = vld [vmem:[#allocation10 + $0x1] sm:$0x1]
        %v2105 = vlaneseq
        %v2106 = vshrl.u32 %v2105, 7
        %v2107 = vsub.s32 0, %v2106
        %v2108 = vrot.slane %v2104, %v2107
        %v2109 = vadd.f32 %v2088, %v2108
        %v2110 = vadd.f32 %v2089, %v2108
        %v2111 = vadd.f32 %v2090, %v2108
        %v2112 = vadd.f32 %v2091, %v2108
        %v2113 = vadd.f32 %v2092, %v2108
        %v2114 = vadd.f32 %v2093, %v2108
        %v2115 = vadd.f32 %v2094, %v2108
        %v2116 = vadd.f32 %v2095, %v2108
        %v2117 = vadd.f32 %v2096, %v2108
        %v2118 = vadd.f32 %v2097, %v2108
        %v2119 = vadd.f32 %v2098, %v2108
        %v2120 = vadd.f32 %v2099, %v2108
        %v2121 = vadd.f32 %v2100, %v2108
        %v2122 = vadd.f32 %v2101, %v2108
        %v2123 = vadd.f32 %v2102, %v2108
        %v2124 = vadd.f32 %v2103, %v2108
        %v2125 = vpack.c.bf16 %v2110, %v2109
        %v2126 = vpack.c.bf16 %v2112, %v2111
        %v2127 = vpack.c.bf16 %v2114, %v2113
        %v2128 = vpack.c.bf16 %v2116, %v2115
        %v2129 = vpack.c.bf16 %v2118, %v2117
        %v2130 = vpack.c.bf16 %v2120, %v2119
        %v2131 = vpack.c.bf16 %v2122, %v2121
        %v2132 = vpack.c.bf16 %v2124, %v2123
        %v2141 = vunpack.c.l.b16 %v2125
        %v2142 = vunpack.c.h.b16 %v2125
        %v2143 = vunpack.c.l.b16 %v2126
        %v2144 = vunpack.c.h.b16 %v2126
        %v2145 = vunpack.c.l.b16 %v2127
        %v2146 = vunpack.c.h.b16 %v2127
        %v2147 = vunpack.c.l.b16 %v2128
        %v2148 = vunpack.c.h.b16 %v2128
        %v2149 = vunpack.c.l.b16 %v2129
        %v2150 = vunpack.c.h.b16 %v2129
        %v2151 = vunpack.c.l.b16 %v2130
        %v2152 = vunpack.c.h.b16 %v2130
        %v2153 = vunpack.c.l.b16 %v2131
        %v2154 = vunpack.c.h.b16 %v2131
        %v2155 = vunpack.c.l.b16 %v2132
        %v2156 = vunpack.c.h.b16 %v2132
        %v2157 = vpack.c.b16 %v2141, %v2141
        %v2158 = vpack.c.b16 %v2142, %v2142
        %v2159 = vpack.c.b16 %v2143, %v2143
        %v2160 = vpack.c.b16 %v2144, %v2144
        %v2161 = vpack.c.b16 %v2145, %v2145
        %v2162 = vpack.c.b16 %v2146, %v2146
        %v2163 = vpack.c.b16 %v2147, %v2147
        %v2164 = vpack.c.b16 %v2148, %v2148
        %v2165 = vpack.c.b16 %v2149, %v2149
        %v2166 = vpack.c.b16 %v2150, %v2150
        %v2167 = vpack.c.b16 %v2151, %v2151
        %v2168 = vpack.c.b16 %v2152, %v2152
        %v2169 = vpack.c.b16 %v2153, %v2153
        %v2170 = vpack.c.b16 %v2154, %v2154
        %v2171 = vpack.c.b16 %v2155, %v2155
        %v2172 = vpack.c.b16 %v2156, %v2156
        %2189 = vst [vmem:[%s427] sm:$0xf] %v2157
        %2190 = vst [vmem:[%s427 + $0x4] sm:$0xf] %v2158
        %2191 = vst [vmem:[%s427 + $0x8] sm:$0xf] %v2159
        %2192 = vst [vmem:[%s427 + $0xc] sm:$0xf] %v2160
        %2193 = vst [vmem:[%s427 + $0x10] sm:$0xf] %v2161
        %2194 = vst [vmem:[%s427 + $0x14] sm:$0xf] %v2162
        %2195 = vst [vmem:[%s427 + $0x18] sm:$0xf] %v2163
        %2196 = vst [vmem:[%s427 + $0x1c] sm:$0xf] %v2164
        %2197 = vst [vmem:[%s427 + $0x20] sm:$0xf] %v2165
        %2198 = vst [vmem:[%s427 + $0x24] sm:$0xf] %v2166
        %2199 = vst [vmem:[%s427 + $0x28] sm:$0xf] %v2167
        %2200 = vst [vmem:[%s427 + $0x2c] sm:$0xf] %v2168
        %2201 = vst [vmem:[%s427 + $0x30] sm:$0xf] %v2169
        %2202 = vst [vmem:[%s427 + $0x34] sm:$0xf] %v2170
        %2203 = vst [vmem:[%s427 + $0x38] sm:$0xf] %v2171
        %2204 = vst [vmem:[%s427 + $0x3c] sm:$0xf] %v2172
        %s2205 = sand.u32 %s168, 1
        %s2206 = scalar_lea.sflag [#allocation4], %s2205
        %s2207 = sand.u32 %s168, 1
        %s2208 = smul.addr %s2207, 128
        %s2209 = scalar_lea.vmem [#allocation11], %s2208
        %s2210 = sand.u32 %s34, 1
        %s2211 = scalar_lea.sflag [#allocation13], %s2210
        %s2212 = sand.u32 %s196, 1
        %s2213 = smul.addr %s2212, 128
        %s2214 = scalar_lea.vmem [#allocation12], %s2213
        %s2215 = sand.u32 %s34, 1
        %s2216 = scalar_lea.sflag [#allocation13], %s2215
        %s2217 = sand.u32 %s224, 1
        %s2218 = smul.addr %s2217, 64
        %s2219 = scalar_lea.vmem [#allocation14], %s2218
        %s2220 = sand.u32 %s252, 1
        %s2221 = scalar_lea.sflag [#allocation16], %s2220
        %s2222 = sand.u32 %s252, 1
        %s2223 = smul.addr %s2222, 64
        %s2224 = scalar_lea.vmem [#allocation15], %s2223
        // Predicated region
        $region61: #{tpu_custom_call.1} parent=39 // pred_check
          %p2225 = pneg %p178
        $region62: #{tpu_custom_call.1} parent=39 // pred_check_branch
          %2227 = sbr.rel (%p2225) target = $region64
        $region63: #{tpu_custom_call.1} parent=39 // pred_region
          %s2228 = smul.u32 16, %s39
          %s2230 = ssub.s32 2048, 2048
          %2231 = vsyncadd %s2206, %s2230
          %s2232 = smul.addr %s2228, 2
          %s2233 = smul.addr %s38, 64
          %s2234 = sadd.s32 %s2232, %s2233
          %s2235 = smul.addr %s2234, 64
          %s2236 = scalar_lea.hbm %s5, %s2235
          %s2237 = sshll.u32 %s2209, 4
          %s2238 = int_to_ptr.vmem [resolvable:$true] %s2237
          %2243 = dma.vmem_to_hbm [thread:$0]  %s2238, 2048, %s2236, %s2206, 128, 128, 8
        $region64: #{tpu_custom_call.1} parent=39 // pred_fallthru
          _
        // Predicated region
        $region65: #{tpu_custom_call.1} parent=39 // pred_check
          %p2244 = pneg %p206
        $region66: #{tpu_custom_call.1} parent=39 // pred_check_branch
          %2246 = sbr.rel (%p2244) target = $region68
        $region67: #{tpu_custom_call.1} parent=39 // pred_region
          %s2247 = smul.u32 16, %s39
          %s2249 = ssub.s32 2048, 2048
          %2250 = vsyncadd %s2211, %s2249
          %s2251 = smul.addr %s2247, 2
          %s2252 = smul.addr %s38, 64
          %s2253 = sadd.s32 %s2251, %s2252
          %s2254 = smul.addr %s2253, 64
          %s2255 = scalar_lea.hbm %s6, %s2254
          %s2256 = sshll.u32 %s2214, 4
          %s2257 = int_to_ptr.vmem [resolvable:$true] %s2256
          %2262 = dma.vmem_to_hbm [thread:$0]  %s2257, 2048, %s2255, %s2211, 128, 128, 8
        $region68: #{tpu_custom_call.1} parent=39 // pred_fallthru
          _
        // Predicated region
        $region69: #{tpu_custom_call.1} parent=39 // pred_check
          %p2263 = pneg %p234
        $region70: #{tpu_custom_call.1} parent=39 // pred_check_branch
          %2265 = sbr.rel (%p2263) target = $region72
        $region71: #{tpu_custom_call.1} parent=39 // pred_region
          %s2266 = smul.u32 16, %s39
          %s2268 = ssub.s32 1024, 1024
          %2269 = vsyncadd %s2216, %s2268
          %s2270 = smul.addr %s38, 32
          %s2271 = sadd.s32 %s2266, %s2270
          %s2272 = smul.addr %s2271, 64
          %s2273 = scalar_lea.hbm %s7, %s2272
          %s2274 = sshll.u32 %s2219, 4
          %s2275 = int_to_ptr.vmem [resolvable:$true] %s2274
          %2280 = dma.vmem_to_hbm [thread:$0]  %s2275, 1024, %s2273, %s2216, 64, 64, 4
        $region72: #{tpu_custom_call.1} parent=39 // pred_fallthru
          _
        // Predicated region
        $region73: #{tpu_custom_call.1} parent=39 // pred_check
          %p2281 = pneg %p262
        $region74: #{tpu_custom_call.1} parent=39 // pred_check_branch
          %2283 = sbr.rel (%p2281) target = $region76
        $region75: #{tpu_custom_call.1} parent=39 // pred_region
          %s2284 = smul.u32 16, %s39
          %s2286 = ssub.s32 1024, 1024
          %2287 = vsyncadd %s2221, %s2286
          %s2288 = smul.addr %s38, 32
          %s2289 = sadd.s32 %s2284, %s2288
          %s2290 = smul.addr %s2289, 64
          %s2291 = scalar_lea.hbm %s8, %s2290
          %s2292 = sshll.u32 %s2224, 4
          %s2293 = int_to_ptr.vmem [resolvable:$true] %s2292
          %2298 = dma.vmem_to_hbm [thread:$0]  %s2293, 1024, %s2291, %s2221, 64, 64, 4
        $region76: #{tpu_custom_call.1} parent=39 // pred_fallthru
          _
      $region40: #{tpu_custom_call.1} parent=5 // pred_fallthru
        _
      %p2299 = scmp.le.s32.totalorder 2, %s29
      // Predicated region
      $region77: #{tpu_custom_call.1} parent=5 // pred_check
        %p2300 = pneg %p2299
      $region78: #{tpu_custom_call.1} parent=5 // pred_check_branch
        %2302 = sbr.rel (%p2300) target = $region80
      $region79: #{tpu_custom_call.1} parent=5 // pred_region
        %s2303 = ssub.s32 %s29, 2
        // Predicated region
        $region81: #{tpu_custom_call.1} parent=79 // pred_check
          %p2304 = pneg %p184
        $region82: #{tpu_custom_call.1} parent=79 // pred_check_branch
          %2306 = sbr.rel (%p2304) target = $region84
        $region83: #{tpu_custom_call.1} parent=79 // pred_region
          %s2307 = sand.u32 %s169, 1
          %s2308 = scalar_lea.sflag [#allocation4], %s2307
          %s2309 = sand.u32 %s169, 1
          %s2310 = smul.addr %s2309, 128
          %s2311 = scalar_lea.vmem [#allocation11], %s2310
          %2312 = dma.done %s2308, 2048
        $region84: #{tpu_custom_call.1} parent=79 // pred_fallthru
          _
        // Predicated region
        $region85: #{tpu_custom_call.1} parent=79 // pred_check
          %p2313 = pneg %p212
        $region86: #{tpu_custom_call.1} parent=79 // pred_check_branch
          %2315 = sbr.rel (%p2313) target = $region88
        $region87: #{tpu_custom_call.1} parent=79 // pred_region
          %s2316 = sand.u32 %s35, 1
          %s2317 = scalar_lea.sflag [#allocation13], %s2316
          %s2318 = sand.u32 %s197, 1
          %s2319 = smul.addr %s2318, 128
          %s2320 = scalar_lea.vmem [#allocation12], %s2319
          %2321 = dma.done %s2317, 2048
        $region88: #{tpu_custom_call.1} parent=79 // pred_fallthru
          _
        // Predicated region
        $region89: #{tpu_custom_call.1} parent=79 // pred_check
          %p2322 = pneg %p240
        $region90: #{tpu_custom_call.1} parent=79 // pred_check_branch
          %2324 = sbr.rel (%p2322) target = $region92
        $region91: #{tpu_custom_call.1} parent=79 // pred_region
          %s2325 = sand.u32 %s35, 1
          %s2326 = scalar_lea.sflag [#allocation13], %s2325
          %s2327 = sand.u32 %s225, 1
          %s2328 = smul.addr %s2327, 64
          %s2329 = scalar_lea.vmem [#allocation14], %s2328
          %2330 = dma.done %s2326, 1024
        $region92: #{tpu_custom_call.1} parent=79 // pred_fallthru
          _
        // Predicated region
        $region93: #{tpu_custom_call.1} parent=79 // pred_check
          %p2331 = pneg %p268
        $region94: #{tpu_custom_call.1} parent=79 // pred_check_branch
          %2333 = sbr.rel (%p2331) target = $region96
        $region95: #{tpu_custom_call.1} parent=79 // pred_region
          %s2334 = sand.u32 %s253, 1
          %s2335 = scalar_lea.sflag [#allocation16], %s2334
          %s2336 = sand.u32 %s253, 1
          %s2337 = smul.addr %s2336, 64
          %s2338 = scalar_lea.vmem [#allocation15], %s2337
          %2339 = dma.done %s2335, 1024
        $region96: #{tpu_custom_call.1} parent=79 // pred_fallthru
          _
      $region80: #{tpu_custom_call.1} parent=5 // pred_fallthru
        _
    $region6: #{tpu_custom_call.1} parent=1 // loop_footer
      %s33 = sadd.s32 1, %s29
    $region7: #{tpu_custom_call.1} parent=1 // loop_footer_branch
      %28 = sbr.rel target = $region3
    $region8: #{tpu_custom_call.1} parent=1 // loop_exit
      _
    %2340 = vsyncpa [#allocation3], 1
    %s2341 = scalar_lea.sflag [#allocation3], 1
    %2342 = vsyncpa %s2341, 1
    %2343 = vsyncpa [#allocation6], 1
    %2344 = vsyncpa [#allocation9], 1
    %2345 = vsyncpa [#allocation4], 1
    %s2346 = scalar_lea.sflag [#allocation4], 1
    %2347 = vsyncpa %s2346, 1
    %2348 = vsyncpa [#allocation13], 1
    %s2349 = scalar_lea.sflag [#allocation13], 1
    %2350 = vsyncpa %s2349, 1
    %2351 = vsyncpa [#allocation16], 1
    %s2352 = scalar_lea.sflag [#allocation16], 1
    %2353 = vsyncpa %s2352, 1

</llo_original>
